<compile_context>
chip_gen: v5e
topology: v5e:2x2
jax: 0.10.0
libtpu: 0.0.40
codegen_flags: <defaults>
</compile_context>

<pallas_src>
import functools
import math

import jax
import jax.numpy as jnp
from jax import lax
from jax.experimental import pallas as pl
from jax.experimental.pallas import tpu as pltpu


# ---------------------------------------------------------------------------
# In-kernel helpers
# ---------------------------------------------------------------------------
def _im2col_same(x, kernel_size):
    """x: (TB, L, C) -> (TB, L, K*C), col[..., k*C:(k+1)*C] = x[:, l + k - pad_l, :] (zeros OOB).

    Matches PyTorch Conv1d(padding='same'): pad_left = (K-1)//2.  Only the (K-1) halo rows are
    zero blocks -- no full padded-scratch zero-fill/copy.
    """
    TB, L, C = x.shape
    pad_l = (kernel_size - 1) // 2
    cols = []
    for k in range(kernel_size):
        s = k - pad_l
        if s == 0:
            cols.append(x)
        elif s > 0:
            cols.append(jnp.concatenate(
                [x[:, s:, :], jnp.zeros((TB, s, C), x.dtype)], axis=1))
        else:
            cols.append(jnp.concatenate(
                [jnp.zeros((TB, -s, C), x.dtype), x[:, :L + s, :]], axis=1))
    return jnp.concatenate(cols, axis=-1)


def _mxu_matmul(x2d, w_ref):
    """bf16 operands, f32 accumulation on the MXU."""
    return lax.dot_general(
        x2d.astype(jnp.bfloat16), w_ref[...],
        dimension_numbers=(((1,), (0,)), ((), ())),
        preferred_element_type=jnp.float32)


def _sum_sumsq(h2d):
    """Single-pass BN statistics: per-channel sum and sum-of-squares -> (1, 2, C)."""
    s1 = jnp.sum(h2d, axis=0, keepdims=True)
    s2 = jnp.sum(h2d * h2d, axis=0, keepdims=True)
    return jnp.concatenate([s1, s2], axis=0)[None]


# ---------------------------------------------------------------------------
# Pass A: conv0 (+bias) and per-tile BN statistics (stats over the bf16-rounded values)
# ---------------------------------------------------------------------------
def _conv0_stats_kernel(x_ref, w_ref, b_ref, h_ref, stats_ref):
    TB, L, Cp = x_ref.shape
    K = w_ref.shape[0] // Cp
    xcol = _im2col_same(x_ref[...], K).reshape(TB * L, K * Cp)
    h = _mxu_matmul(xcol, w_ref) + b_ref[...]                  # (TB*L, Cp) f32
    hb = h.astype(jnp.bfloat16)                                # stored precision
    h_ref[...] = hb.reshape(TB, L, Cp)
    stats_ref[...] = _sum_sumsq(hb.astype(jnp.float32))


# ---------------------------------------------------------------------------
# Pass B: BN0 (folded scale/shift) + ReLU + conv1 (+bias) and per-tile BN statistics
# ---------------------------------------------------------------------------
def _bn_relu_conv1_stats_kernel(h_ref, sc_ref, sh_ref, w_ref, b_ref, g_ref, stats_ref):
    TB, L, Cp = h_ref.shape
    K = w_ref.shape[0] // Cp
    a = jnp.maximum(h_ref[...] * sc_ref[...] + sh_ref[...], 0.0)     # f32
    acol = _im2col_same(a, K).reshape(TB * L, K * Cp)
    g = _mxu_matmul(acol, w_ref) + b_ref[...]
    gb = g.astype(jnp.bfloat16)
    g_ref[...] = gb.reshape(TB, L, Cp)
    stats_ref[...] = _sum_sumsq(gb.astype(jnp.float32))


# ---------------------------------------------------------------------------
# Pass C: BN1 + residual add + ReLU, then the fused strided "pool" conv
# ---------------------------------------------------------------------------
def _bn_residual_pool_kernel(g_ref, x_ref, sc_ref, sh_ref, wp_ref, bp_ref,
                             res_ref, pool_ref):
    TB, L, Cp = x_ref.shape
    P = wp_ref.shape[0] // Cp
    Lp = pool_ref.shape[1]

    r = jnp.maximum(x_ref[...] + g_ref[...] * sc_ref[...] + sh_ref[...], 0.0)
    res_ref[...] = r                                            # x_residual output (f32)

    # Conv1d(kernel=P, stride=P, no padding): non-overlapping windows.  Gather the P rows of
    # each window onto the lane axis via sublane-strided reads of the just-written output and
    # reduce them with a single (TB*Lp, P*Cp) @ (P*Cp, Cp) MXU matmul.
    if P == 1:
        rcol = r.reshape(TB * L, Cp)
    else:
        cols = [res_ref[:, pl.ds(p, Lp, stride=P), :] for p in range(P)]
        rcol = jnp.concatenate(cols, axis=-1).reshape(TB * Lp, P * Cp)
    y = _mxu_matmul(rcol, wp_ref) + bp_ref[...]
    pool_ref[...] = y.reshape(TB, Lp, Cp)


# ---------------------------------------------------------------------------
# Host-side wrapper
# ---------------------------------------------------------------------------
def _round_up(n, m):
    return ((n + m - 1) // m) * m


def _vmem_capacity_bytes():
    try:
        return int(pltpu.get_tpu_info().vmem_capacity_bytes)
    except Exception:                # conservative fallback: v7x has 64 MiB per TensorCore
        return 64 * 1024 * 1024


def _pick_batch_tile(B, L, Cp, K):
    """Largest batch tile (dividing B) whose working set fits a conservative VMEM budget."""
    budget = _vmem_capacity_bytes() // 4          # double-buffered ins/outs + weights + temps
    per_batch = (4 + K) * L * Cp * 4              # rough f32 bytes resident per batch row
    tb = max(1, min(B, budget // max(per_batch, 1)))
    while B % tb:                                 # exact tiling keeps the global BN stats exact
        tb -= 1
    return tb


def _conv_weight_cols(w, c_pad):
    """PyTorch Conv1d weight (C_out, C_in, K) -> (K*Cp, Cp) bf16 matrix for the im2col matmul."""
    c_out, c_in, k = w.shape
    wt = jnp.transpose(w, (2, 1, 0)).astype(jnp.float32)       # (K, C_in, C_out)
    wt = jnp.pad(wt, ((0, 0), (0, c_pad - c_in), (0, c_pad - c_out)))
    return wt.reshape(k * c_pad, c_pad).astype(jnp.bfloat16)


def _pad_vec(v, c_pad):
    return jnp.pad(v.astype(jnp.float32), (0, c_pad - v.shape[0])).reshape(1, c_pad)


def _fold_bn(partial_stats, gamma_p, beta_p, count, eps):
    """Fold global batch statistics into per-channel scale/shift (training-mode BatchNorm1d)."""
    tot = jnp.sum(partial_stats, axis=0)                        # (2, Cp)
    mean = tot[0] / count
    var = jnp.maximum(tot[1] / count - mean * mean, 0.0)        # biased batch variance
    scale = gamma_p / jnp.sqrt(var + eps)
    shift = beta_p - mean * scale
    return scale, shift                                         # (1, Cp) each


def _tiled(block):
    nd = len(block)
    return pl.BlockSpec(block, lambda i: (i,) + (0,) * (nd - 1))


def _whole(block):
    nd = len(block)
    return pl.BlockSpec(block, lambda i: (0,) * nd)


def residual_block(inputs_ncl, params, *, kernel_size, pooling=1, eps=1e-5, batch_tile=None):
    """PyTorch-layout forward: (B, C, L) -> (x_pool (B, C, L//pooling), x_residual (B, C, L))."""
    B, C, L = inputs_ncl.shape
    K = int(kernel_size)
    P = int(pooling)
    Lp = L // P
    Cp = max(128, _round_up(C, 128))                 # lane-dense channel axis

    if batch_tile is None:
        batch_tile = _pick_batch_tile(B, L, Cp, K)
    TB = int(batch_tile)
    assert B % TB == 0, "batch_tile must divide the batch size"
    nb = B // TB

    cparams = pltpu.CompilerParams(
        dimension_semantics=("parallel",),           # shard batch tiles across TCs (v7x megacore)
        vmem_limit_bytes=int(min(_vmem_capacity_bytes() // 2, 96 * 1024 * 1024)))

    # NCL -> channels-last + channel padding (glue).
    # TODO(synk): drop these transposes if the surrounding model is channels-last already.
    x_blc = jnp.pad(jnp.transpose(inputs_ncl, (0, 2, 1)).astype(jnp.float32),
                    ((0, 0), (0, 0), (0, Cp - C)))

    w0 = _conv_weight_cols(params["w0"], Cp)
    w1 = _conv_weight_cols(params["w1"], Cp)
    wp = _conv_weight_cols(params["wp"], Cp)
    b0 = _pad_vec(params["b0"], Cp)
    b1 = _pad_vec(params["b1"], Cp)
    bp = _pad_vec(params["bp"], Cp)
    gam0, bet0 = _pad_vec(params["gamma0"], Cp), _pad_vec(params["beta0"], Cp)
    gam1, bet1 = _pad_vec(params["gamma1"], Cp), _pad_vec(params["beta1"], Cp)

    act_spec = _tiled((TB, L, Cp))
    stat_spec = _tiled((1, 2, Cp))
    vec_spec = _whole((1, Cp))
    act_f32 = jax.ShapeDtypeStruct((B, L, Cp), jnp.float32)
    act_bf16 = jax.ShapeDtypeStruct((B, L, Cp), jnp.bfloat16)   # HBM-crossing intermediates
    stat_shape = jax.ShapeDtypeStruct((nb, 2, Cp), jnp.float32)

    # Pass A: conv0 + per-tile stats.
    h0, stats0 = pl.pallas_call(
        _conv0_stats_kernel,
        grid=(nb,),
        in_specs=[act_spec, _whole((K * Cp, Cp)), vec_spec],
        out_specs=(act_spec, stat_spec),
        out_shape=(act_bf16, stat_shape),
        compiler_params=cparams,
    )(x_blc, w0, b0)

    n_stat = float(B * L)
    sc0, sh0 = _fold_bn(stats0, gam0, bet0, n_stat, eps)

    # Pass B: BN0 + ReLU + conv1 + per-tile stats.
    g1, stats1 = pl.pallas_call(
        _bn_relu_conv1_stats_kernel,
        grid=(nb,),
        in_specs=[act_spec, vec_spec, vec_spec, _whole((K * Cp, Cp)), vec_spec],
        out_specs=(act_spec, stat_spec),
        out_shape=(act_bf16, stat_shape),
        compiler_params=cparams,
    )(h0, sc0, sh0, w1, b1)

    sc1, sh1 = _fold_bn(stats1, gam1, bet1, n_stat, eps)

    # Pass C: BN1 + residual + ReLU + fused strided pool conv.
    x_res_blc, x_pool_blc = pl.pallas_call(
        _bn_residual_pool_kernel,
        grid=(nb,),
        in_specs=[act_spec, act_spec, vec_spec, vec_spec, _whole((P * Cp, Cp)), vec_spec],
        out_specs=(act_spec, _tiled((TB, Lp, Cp))),
        out_shape=(act_f32, jax.ShapeDtypeStruct((B, Lp, Cp), jnp.float32)),
        compiler_params=cparams,
    )(g1, x_blc, sc1, sh1, wp, bp)

    # Channels-last -> NCL (glue), dropping the channel padding.
    x_residual = jnp.transpose(x_res_blc[:, :, :C], (0, 2, 1))
    x_pool = jnp.transpose(x_pool_blc[:, :, :C], (0, 2, 1))
    return x_pool, x_residual


# ---------------------------------------------------------------------------
# Test harness
# ---------------------------------------------------------------------------
def _init_params(key, C, K, P):
    """Parameter shapes mirror the PyTorch module (Conv1d weights are (C_out, C_in, K))."""
    ks = jax.random.split(key, 10)
    u = jax.random.uniform
    bk = 1.0 / math.sqrt(C * K)
    bpool = 1.0 / math.sqrt(C * P)
    return {
        "w0": u(ks[0], (C, C, K), jnp.float32, -bk, bk),
        "b0": u(ks[1], (C,), jnp.float32, -bk, bk),
        "gamma0": u(ks[2], (C,), jnp.float32, 0.5, 1.5),
        "beta0": u(ks[3], (C,), jnp.float32, -0.1, 0.1),
        "w1": u(ks[4], (C, C, K), jnp.float32, -bk, bk),
        "b1": u(ks[5], (C,), jnp.float32, -bk, bk),
        "gamma1": u(ks[6], (C,), jnp.float32, 0.5, 1.5),
        "beta1": u(ks[7], (C,), jnp.float32, -0.1, 0.1),
        "wp": u(ks[8], (C, C, P), jnp.float32, -bpool, bpool),
        "bp": u(ks[9], (C,), jnp.float32, -bpool, bpool),
    }


def _reference_forward(x, params, *, kernel_size, pooling, eps=1e-5):
    """Pure-JAX reference of the PyTorch forward (NCL layout, training-mode BatchNorm).

    Conv operands and the hidden conv outputs are rounded to bf16 to mirror the kernel's MXU
    precision (f32 accumulation) and bf16 intermediate storage, so the comparison tolerance
    stays meaningful.
    """
    K, P = kernel_size, pooling
    pad_l = (K - 1) // 2
    pad_r = (K - 1) - pad_l
    q = lambda t: t.astype(jnp.bfloat16).astype(jnp.float32)

    def conv(xv, w, b, stride, pad):
        out = lax.conv_general_dilated(q(xv), q(w), (stride,), [pad],
                                       dimension_numbers=("NCH", "OIH", "NCH"))
        return out + b[None, :, None]

    def bn(xv, g, be):
        mean = jnp.mean(xv, axis=(0, 2), keepdims=True)
        var = jnp.mean((xv - mean) ** 2, axis=(0, 2), keepdims=True)   # biased
        return g[None, :, None] * (xv - mean) / jnp.sqrt(var + eps) + be[None, :, None]

    h = q(conv(x, params["w0"], params["b0"], 1, (pad_l, pad_r)))      # bf16-stored intermediate
    h = jax.nn.relu(bn(h, params["gamma0"], params["beta0"]))
    g = q(conv(h, params["w1"], params["b1"], 1, (pad_l, pad_r)))      # bf16-stored intermediate
    g = bn(g, params["gamma1"], params["beta1"])
    x_residual = jax.nn.relu(x + g)
    x_pool = conv(x_residual, params["wp"], params["bp"], P, (0, 0))
    return x_pool, x_residual


if __name__ == "__main__":
    B, C, L = 2, 4, 16
    K = 3
    POOLING = 2

    key = jax.random.PRNGKey(0)
    k_x, k_p = jax.random.split(key)
    x = jax.random.normal(k_x, (B, C, L), jnp.float32)
    params = _init_params(k_p, C, K, POOLING)

    # batch_tile=1 -> grid of B tiles so the multi-step BlockSpec pipeline is exercised.
    fwd = jax.jit(functools.partial(residual_block, kernel_size=K, pooling=POOLING,
                                    batch_tile=1))
    x_pool, x_residual = jax.block_until_ready(fwd(x, params))

    ref_pool, ref_residual = _reference_forward(x, params, kernel_size=K, pooling=POOLING)
    assert x_pool.shape == (B, C, L // POOLING), x_pool.shape
    assert x_residual.shape == (B, C, L), x_residual.shape
    # Tolerance accounts for bf16 MXU operands / bf16 intermediates (f32 accumulation) on both sides.
    assert jnp.allclose(x_residual, ref_residual, rtol=2e-2, atol=2e-2), \
        float(jnp.max(jnp.abs(x_residual - ref_residual)))
    assert jnp.allclose(x_pool, ref_pool, rtol=2e-2, atol=2e-2), \
        float(jnp.max(jnp.abs(x_pool - ref_pool)))
    print("KERNEL_OK")
</pallas_src>

<mosaic_0001>
module attributes {stable_mosaic.version = 11 : i64} {
  func.func @_conv0_stats_kernel(%arg0: i32, %arg1: memref<1x16x128xf32, #tpu.memory_space<vmem>>, %arg2: memref<384x128xbf16, #tpu.memory_space<vmem>>, %arg3: memref<1x128xf32, #tpu.memory_space<vmem>>, %arg4: memref<1x16x128xbf16, #tpu.memory_space<vmem>>, %arg5: memref<1x2x128xf32, #tpu.memory_space<vmem>>) attributes {dimension_semantics = [#tpu.dimension_semantics<parallel>], iteration_bounds = array<i64: 2>, scalar_prefetch = 0 : i64, scratch_operands = 0 : i64, tpu.core_type = #tpu.core_type<tc>, window_params = [{transform_indices = @transform_0, window_bounds = array<i64: 1, 16, 128>}, {pipeline_mode = #tpu.pipeline_mode<synchronous>, transform_indices = @transform_1, window_bounds = array<i64: 384, 128>}, {pipeline_mode = #tpu.pipeline_mode<synchronous>, transform_indices = @transform_2, window_bounds = array<i64: 1, 128>}, {transform_indices = @transform_3, window_bounds = array<i64: 1, 16, 128>}, {transform_indices = @transform_4, window_bounds = array<i64: 1, 2, 128>}]} {
    %c0 = arith.constant 0 : index
    %c0_0 = arith.constant 0 : index
    %c0_1 = arith.constant 0 : index
    %0 = vector.load %arg1[%c0, %c0_0, %c0_1] : memref<1x16x128xf32, #tpu.memory_space<vmem>>, vector<1x16x128xf32>
    %cst = arith.constant 0.000000e+00 : f32
    %1 = vector.broadcast %cst : f32 to vector<1x1x128xf32>
    %2 = vector.extract_strided_slice %0 {offsets = [0, 0, 0], sizes = [1, 15, 128], strides = [1, 1, 1]} : vector<1x16x128xf32> to vector<1x15x128xf32>
    %3 = tpu.concatenate %1, %2 in 1 : vector<1x1x128xf32>, vector<1x15x128xf32> -> vector<1x16x128xf32>
    %4 = vector.extract_strided_slice %0 {offsets = [0, 1, 0], sizes = [1, 15, 128], strides = [1, 1, 1]} : vector<1x16x128xf32> to vector<1x15x128xf32>
    %cst_2 = arith.constant 0.000000e+00 : f32
    %5 = vector.broadcast %cst_2 : f32 to vector<1x1x128xf32>
    %6 = tpu.concatenate %4, %5 in 1 : vector<1x15x128xf32>, vector<1x1x128xf32> -> vector<1x16x128xf32>
    %7 = tpu.concatenate %3, %0, %6 in 2 : vector<1x16x128xf32>, vector<1x16x128xf32>, vector<1x16x128xf32> -> vector<1x16x384xf32>
    %8 = vector.shape_cast %7 : vector<1x16x384xf32> to vector<16x384xf32>
    %9 = arith.truncf %8 : vector<16x384xf32> to vector<16x384xbf16>
    %c0_3 = arith.constant 0 : index
    %c0_4 = arith.constant 0 : index
    %10 = vector.load %arg2[%c0_3, %c0_4] : memref<384x128xbf16, #tpu.memory_space<vmem>>, vector<384x128xbf16>
    %cst_5 = arith.constant dense<0.000000e+00> : vector<16x128xf32>
    %11 = tpu.matmul %9, %10, %cst_5 {dimension_numbers = #tpu.dot_dimension_numbers<[1], [0], [0], [1], [0, 0, 1, 1], [], []>} : vector<16x384xbf16>, vector<384x128xbf16>, vector<16x128xf32> -> vector<16x128xf32>
    %c0_6 = arith.constant 0 : index
    %c0_7 = arith.constant 0 : index
    %12 = vector.load %arg3[%c0_6, %c0_7] : memref<1x128xf32, #tpu.memory_space<vmem>>, vector<1x128xf32>
    %13 = vector.broadcast %12 : vector<1x128xf32> to vector<16x128xf32>
    %14 = arith.addf %11, %13 : vector<16x128xf32>
    %15 = arith.truncf %14 : vector<16x128xf32> to vector<16x128xbf16>
    %16 = vector.shape_cast %15 : vector<16x128xbf16> to vector<1x16x128xbf16>
    %c0_8 = arith.constant 0 : index
    %c0_9 = arith.constant 0 : index
    %c0_10 = arith.constant 0 : index
    %17 = vector.load %arg4[%c0_8, %c0_9, %c0_10] : memref<1x16x128xbf16, #tpu.memory_space<vmem>>, vector<1x16x128xbf16>
    tpu.vector_store %arg4[%c0_8, %c0_9, %c0_10], %16 {strides = array<i32>} : memref<1x16x128xbf16, #tpu.memory_space<vmem>>, vector<1x16x128xbf16>,
    %18 = arith.extf %15 : vector<16x128xbf16> to vector<16x128xf32>
    %cst_11 = arith.constant dense<0.000000e+00> : vector<128xf32>
    %19 = vector.multi_reduction <add>, %18, %cst_11 [0] : vector<16x128xf32> to vector<128xf32>
    %20 = vector.shape_cast %19 : vector<128xf32> to vector<1x128xf32>
    %21 = arith.mulf %18, %18 : vector<16x128xf32>
    %cst_12 = arith.constant dense<0.000000e+00> : vector<128xf32>
    %22 = vector.multi_reduction <add>, %21, %cst_12 [0] : vector<16x128xf32> to vector<128xf32>
    %23 = vector.shape_cast %22 : vector<128xf32> to vector<1x128xf32>
    %24 = tpu.concatenate %20, %23 in 0 : vector<1x128xf32>, vector<1x128xf32> -> vector<2x128xf32>
    %25 = vector.shape_cast %24 : vector<2x128xf32> to vector<1x2x128xf32>
    %c0_13 = arith.constant 0 : index
    %c0_14 = arith.constant 0 : index
    %c0_15 = arith.constant 0 : index
    %26 = vector.load %arg5[%c0_13, %c0_14, %c0_15] : memref<1x2x128xf32, #tpu.memory_space<vmem>>, vector<1x2x128xf32>
    tpu.vector_store %arg5[%c0_13, %c0_14, %c0_15], %25 {strides = array<i32>} : memref<1x2x128xf32, #tpu.memory_space<vmem>>, vector<1x2x128xf32>,
    return
  }
  func.func @transform_0(%arg0: i32) -> (i32, i32, i32) {
    %c0_i32 = arith.constant 0 : i32
    %c0_i32_0 = arith.constant 0 : i32
    %c0_i32_1 = arith.constant 0 : i32
    return %arg0, %c0_i32, %c0_i32_0 : i32, i32, i32
  }
  func.func @transform_1(%arg0: i32) -> (i32, i32) {
    %c0_i32 = arith.constant 0 : i32
    %c0_i32_0 = arith.constant 0 : i32
    %c0_i32_1 = arith.constant 0 : i32
    return %c0_i32, %c0_i32_0 : i32, i32
  }
  func.func @transform_2(%arg0: i32) -> (i32, i32) {
    %c0_i32 = arith.constant 0 : i32
    %c0_i32_0 = arith.constant 0 : i32
    %c0_i32_1 = arith.constant 0 : i32
    return %c0_i32, %c0_i32_0 : i32, i32
  }
  func.func @transform_3(%arg0: i32) -> (i32, i32, i32) {
    %c0_i32 = arith.constant 0 : i32
    %c0_i32_0 = arith.constant 0 : i32
    %c0_i32_1 = arith.constant 0 : i32
    return %arg0, %c0_i32, %c0_i32_0 : i32, i32, i32
  }
  func.func @transform_4(%arg0: i32) -> (i32, i32, i32) {
    %c0_i32 = arith.constant 0 : i32
    %c0_i32_0 = arith.constant 0 : i32
    %c0_i32_1 = arith.constant 0 : i32
    return %arg0, %c0_i32, %c0_i32_0 : i32, i32, i32
  }
}

module attributes {stable_mosaic.version = 11 : i64} {
  func.func @_bn_relu_conv1_stats_kernel(%arg0: i32, %arg1: memref<1x16x128xbf16, #tpu.memory_space<vmem>>, %arg2: memref<1x128xf32, #tpu.memory_space<vmem>>, %arg3: memref<1x128xf32, #tpu.memory_space<vmem>>, %arg4: memref<384x128xbf16, #tpu.memory_space<vmem>>, %arg5: memref<1x128xf32, #tpu.memory_space<vmem>>, %arg6: memref<1x16x128xbf16, #tpu.memory_space<vmem>>, %arg7: memref<1x2x128xf32, #tpu.memory_space<vmem>>) attributes {dimension_semantics = [#tpu.dimension_semantics<parallel>], iteration_bounds = array<i64: 2>, scalar_prefetch = 0 : i64, scratch_operands = 0 : i64, tpu.core_type = #tpu.core_type<tc>, window_params = [{transform_indices = @transform_0, window_bounds = array<i64: 1, 16, 128>}, {pipeline_mode = #tpu.pipeline_mode<synchronous>, transform_indices = @transform_1, window_bounds = array<i64: 1, 128>}, {pipeline_mode = #tpu.pipeline_mode<synchronous>, transform_indices = @transform_2, window_bounds = array<i64: 1, 128>}, {pipeline_mode = #tpu.pipeline_mode<synchronous>, transform_indices = @transform_3, window_bounds = array<i64: 384, 128>}, {pipeline_mode = #tpu.pipeline_mode<synchronous>, transform_indices = @transform_4, window_bounds = array<i64: 1, 128>}, {transform_indices = @transform_5, window_bounds = array<i64: 1, 16, 128>}, {transform_indices = @transform_6, window_bounds = array<i64: 1, 2, 128>}]} {
    %c0 = arith.constant 0 : index
    %c0_0 = arith.constant 0 : index
    %c0_1 = arith.constant 0 : index
    %0 = vector.load %arg1[%c0, %c0_0, %c0_1] : memref<1x16x128xbf16, #tpu.memory_space<vmem>>, vector<1x16x128xbf16>
    %c0_2 = arith.constant 0 : index
    %c0_3 = arith.constant 0 : index
    %1 = vector.load %arg2[%c0_2, %c0_3] : memref<1x128xf32, #tpu.memory_space<vmem>>, vector<1x128xf32>
    %2 = arith.extf %0 : vector<1x16x128xbf16> to vector<1x16x128xf32>
    %3 = vector.shape_cast %1 : vector<1x128xf32> to vector<1x1x128xf32>
    %4 = vector.broadcast %3 : vector<1x1x128xf32> to vector<1x16x128xf32>
    %5 = arith.mulf %2, %4 : vector<1x16x128xf32>
    %c0_4 = arith.constant 0 : index
    %c0_5 = arith.constant 0 : index
    %6 = vector.load %arg3[%c0_4, %c0_5] : memref<1x128xf32, #tpu.memory_space<vmem>>, vector<1x128xf32>
    %7 = vector.shape_cast %6 : vector<1x128xf32> to vector<1x1x128xf32>
    %8 = vector.broadcast %7 : vector<1x1x128xf32> to vector<1x16x128xf32>
    %9 = arith.addf %5, %8 : vector<1x16x128xf32>
    %cst = arith.constant 0.000000e+00 : f32
    %10 = vector.broadcast %cst : f32 to vector<1x16x128xf32>
    %11 = arith.maximumf %9, %10 : vector<1x16x128xf32>
    %cst_6 = arith.constant 0.000000e+00 : f32
    %12 = vector.broadcast %cst_6 : f32 to vector<1x1x128xf32>
    %13 = vector.extract_strided_slice %11 {offsets = [0, 0, 0], sizes = [1, 15, 128], strides = [1, 1, 1]} : vector<1x16x128xf32> to vector<1x15x128xf32>
    %14 = tpu.concatenate %12, %13 in 1 : vector<1x1x128xf32>, vector<1x15x128xf32> -> vector<1x16x128xf32>
    %15 = vector.extract_strided_slice %11 {offsets = [0, 1, 0], sizes = [1, 15, 128], strides = [1, 1, 1]} : vector<1x16x128xf32> to vector<1x15x128xf32>
    %cst_7 = arith.constant 0.000000e+00 : f32
    %16 = vector.broadcast %cst_7 : f32 to vector<1x1x128xf32>
    %17 = tpu.concatenate %15, %16 in 1 : vector<1x15x128xf32>, vector<1x1x128xf32> -> vector<1x16x128xf32>
    %18 = tpu.concatenate %14, %11, %17 in 2 : vector<1x16x128xf32>, vector<1x16x128xf32>, vector<1x16x128xf32> -> vector<1x16x384xf32>
    %19 = vector.shape_cast %18 : vector<1x16x384xf32> to vector<16x384xf32>
    %20 = arith.truncf %19 : vector<16x384xf32> to vector<16x384xbf16>
    %c0_8 = arith.constant 0 : index
    %c0_9 = arith.constant 0 : index
    %21 = vector.load %arg4[%c0_8, %c0_9] : memref<384x128xbf16, #tpu.memory_space<vmem>>, vector<384x128xbf16>
    %cst_10 = arith.constant dense<0.000000e+00> : vector<16x128xf32>
    %22 = tpu.matmul %20, %21, %cst_10 {dimension_numbers = #tpu.dot_dimension_numbers<[1], [0], [0], [1], [0, 0, 1, 1], [], []>} : vector<16x384xbf16>, vector<384x128xbf16>, vector<16x128xf32> -> vector<16x128xf32>
    %c0_11 = arith.constant 0 : index
    %c0_12 = arith.constant 0 : index
    %23 = vector.load %arg5[%c0_11, %c0_12] : memref<1x128xf32, #tpu.memory_space<vmem>>, vector<1x128xf32>
    %24 = vector.broadcast %23 : vector<1x128xf32> to vector<16x128xf32>
    %25 = arith.addf %22, %24 : vector<16x128xf32>
    %26 = arith.truncf %25 : vector<16x128xf32> to vector<16x128xbf16>
    %27 = vector.shape_cast %26 : vector<16x128xbf16> to vector<1x16x128xbf16>
    %c0_13 = arith.constant 0 : index
    %c0_14 = arith.constant 0 : index
    %c0_15 = arith.constant 0 : index
    %28 = vector.load %arg6[%c0_13, %c0_14, %c0_15] : memref<1x16x128xbf16, #tpu.memory_space<vmem>>, vector<1x16x128xbf16>
    tpu.vector_store %arg6[%c0_13, %c0_14, %c0_15], %27 {strides = array<i32>} : memref<1x16x128xbf16, #tpu.memory_space<vmem>>, vector<1x16x128xbf16>,
    %29 = arith.extf %26 : vector<16x128xbf16> to vector<16x128xf32>
    %cst_16 = arith.constant dense<0.000000e+00> : vector<128xf32>
    %30 = vector.multi_reduction <add>, %29, %cst_16 [0] : vector<16x128xf32> to vector<128xf32>
    %31 = vector.shape_cast %30 : vector<128xf32> to vector<1x128xf32>
    %32 = arith.mulf %29, %29 : vector<16x128xf32>
    %cst_17 = arith.constant dense<0.000000e+00> : vector<128xf32>
    %33 = vector.multi_reduction <add>, %32, %cst_17 [0] : vector<16x128xf32> to vector<128xf32>
    %34 = vector.shape_cast %33 : vector<128xf32> to vector<1x128xf32>
    %35 = tpu.concatenate %31, %34 in 0 : vector<1x128xf32>, vector<1x128xf32> -> vector<2x128xf32>
    %36 = vector.shape_cast %35 : vector<2x128xf32> to vector<1x2x128xf32>
    %c0_18 = arith.constant 0 : index
    %c0_19 = arith.constant 0 : index
    %c0_20 = arith.constant 0 : index
    %37 = vector.load %arg7[%c0_18, %c0_19, %c0_20] : memref<1x2x128xf32, #tpu.memory_space<vmem>>, vector<1x2x128xf32>
    tpu.vector_store %arg7[%c0_18, %c0_19, %c0_20], %36 {strides = array<i32>} : memref<1x2x128xf32, #tpu.memory_space<vmem>>, vector<1x2x128xf32>,
    return
  }
  func.func @transform_0(%arg0: i32) -> (i32, i32, i32) {
    %c0_i32 = arith.constant 0 : i32
    %c0_i32_0 = arith.constant 0 : i32
    %c0_i32_1 = arith.constant 0 : i32
    return %arg0, %c0_i32, %c0_i32_0 : i32, i32, i32
  }
  func.func @transform_1(%arg0: i32) -> (i32, i32) {
    %c0_i32 = arith.constant 0 : i32
    %c0_i32_0 = arith.constant 0 : i32
    %c0_i32_1 = arith.constant 0 : i32
    return %c0_i32, %c0_i32_0 : i32, i32
  }
  func.func @transform_2(%arg0: i32) -> (i32, i32) {
    %c0_i32 = arith.constant 0 : i32
    %c0_i32_0 = arith.constant 0 : i32
    %c0_i32_1 = arith.constant 0 : i32
    return %c0_i32, %c0_i32_0 : i32, i32
  }
  func.func @transform_3(%arg0: i32) -> (i32, i32) {
    %c0_i32 = arith.constant 0 : i32
    %c0_i32_0 = arith.constant 0 : i32
    %c0_i32_1 = arith.constant 0 : i32
    return %c0_i32, %c0_i32_0 : i32, i32
  }
  func.func @transform_4(%arg0: i32) -> (i32, i32) {
    %c0_i32 = arith.constant 0 : i32
    %c0_i32_0 = arith.constant 0 : i32
    %c0_i32_1 = arith.constant 0 : i32
    return %c0_i32, %c0_i32_0 : i32, i32
  }
  func.func @transform_5(%arg0: i32) -> (i32, i32, i32) {
    %c0_i32 = arith.constant 0 : i32
    %c0_i32_0 = arith.constant 0 : i32
    %c0_i32_1 = arith.constant 0 : i32
    return %arg0, %c0_i32, %c0_i32_0 : i32, i32, i32
  }
  func.func @transform_6(%arg0: i32) -> (i32, i32, i32) {
    %c0_i32 = arith.constant 0 : i32
    %c0_i32_0 = arith.constant 0 : i32
    %c0_i32_1 = arith.constant 0 : i32
    return %arg0, %c0_i32, %c0_i32_0 : i32, i32, i32
  }
}

module attributes {stable_mosaic.version = 11 : i64} {
  func.func @_bn_residual_pool_kernel(%arg0: i32, %arg1: memref<1x16x128xbf16, #tpu.memory_space<vmem>>, %arg2: memref<1x16x128xf32, #tpu.memory_space<vmem>>, %arg3: memref<1x128xf32, #tpu.memory_space<vmem>>, %arg4: memref<1x128xf32, #tpu.memory_space<vmem>>, %arg5: memref<256x128xbf16, #tpu.memory_space<vmem>>, %arg6: memref<1x128xf32, #tpu.memory_space<vmem>>, %arg7: memref<1x16x128xf32, #tpu.memory_space<vmem>>, %arg8: memref<1x8x128xf32, #tpu.memory_space<vmem>>) attributes {dimension_semantics = [#tpu.dimension_semantics<parallel>], iteration_bounds = array<i64: 2>, scalar_prefetch = 0 : i64, scratch_operands = 0 : i64, tpu.core_type = #tpu.core_type<tc>, window_params = [{transform_indices = @transform_0, window_bounds = array<i64: 1, 16, 128>}, {transform_indices = @transform_1, window_bounds = array<i64: 1, 16, 128>}, {pipeline_mode = #tpu.pipeline_mode<synchronous>, transform_indices = @transform_2, window_bounds = array<i64: 1, 128>}, {pipeline_mode = #tpu.pipeline_mode<synchronous>, transform_indices = @transform_3, window_bounds = array<i64: 1, 128>}, {pipeline_mode = #tpu.pipeline_mode<synchronous>, transform_indices = @transform_4, window_bounds = array<i64: 256, 128>}, {pipeline_mode = #tpu.pipeline_mode<synchronous>, transform_indices = @transform_5, window_bounds = array<i64: 1, 128>}, {transform_indices = @transform_6, window_bounds = array<i64: 1, 16, 128>}, {transform_indices = @transform_7, window_bounds = array<i64: 1, 8, 128>}]} {
    %c0 = arith.constant 0 : index
    %c0_0 = arith.constant 0 : index
    %c0_1 = arith.constant 0 : index
    %0 = vector.load %arg2[%c0, %c0_0, %c0_1] : memref<1x16x128xf32, #tpu.memory_space<vmem>>, vector<1x16x128xf32>
    %c0_2 = arith.constant 0 : index
    %c0_3 = arith.constant 0 : index
    %c0_4 = arith.constant 0 : index
    %1 = vector.load %arg1[%c0_2, %c0_3, %c0_4] : memref<1x16x128xbf16, #tpu.memory_space<vmem>>, vector<1x16x128xbf16>
    %c0_5 = arith.constant 0 : index
    %c0_6 = arith.constant 0 : index
    %2 = vector.load %arg3[%c0_5, %c0_6] : memref<1x128xf32, #tpu.memory_space<vmem>>, vector<1x128xf32>
    %3 = arith.extf %1 : vector<1x16x128xbf16> to vector<1x16x128xf32>
    %4 = vector.shape_cast %2 : vector<1x128xf32> to vector<1x1x128xf32>
    %5 = vector.broadcast %4 : vector<1x1x128xf32> to vector<1x16x128xf32>
    %6 = arith.mulf %3, %5 : vector<1x16x128xf32>
    %7 = arith.addf %0, %6 : vector<1x16x128xf32>
    %c0_7 = arith.constant 0 : index
    %c0_8 = arith.constant 0 : index
    %8 = vector.load %arg4[%c0_7, %c0_8] : memref<1x128xf32, #tpu.memory_space<vmem>>, vector<1x128xf32>
    %9 = vector.shape_cast %8 : vector<1x128xf32> to vector<1x1x128xf32>
    %10 = vector.broadcast %9 : vector<1x1x128xf32> to vector<1x16x128xf32>
    %11 = arith.addf %7, %10 : vector<1x16x128xf32>
    %cst = arith.constant 0.000000e+00 : f32
    %12 = vector.broadcast %cst : f32 to vector<1x16x128xf32>
    %13 = arith.maximumf %11, %12 : vector<1x16x128xf32>
    %c0_9 = arith.constant 0 : index
    %c0_10 = arith.constant 0 : index
    %c0_11 = arith.constant 0 : index
    %14 = vector.load %arg7[%c0_9, %c0_10, %c0_11] : memref<1x16x128xf32, #tpu.memory_space<vmem>>, vector<1x16x128xf32>
    tpu.vector_store %arg7[%c0_9, %c0_10, %c0_11], %13 {strides = array<i32>} : memref<1x16x128xf32, #tpu.memory_space<vmem>>, vector<1x16x128xf32>,
    %c0_12 = arith.constant 0 : index
    %c0_13 = arith.constant 0 : index
    %c0_14 = arith.constant 0 : index
    %15 = tpu.strided_load %arg7[%c0_12, %c0_13, %c0_14] {strides = array<i32: 1, 2, 1>} : memref<1x16x128xf32, #tpu.memory_space<vmem>>, vector<1x8x128xf32>
    %c0_15 = arith.constant 0 : index
    %c1 = arith.constant 1 : index
    %c0_16 = arith.constant 0 : index
    %16 = tpu.strided_load %arg7[%c0_15, %c1, %c0_16] {strides = array<i32: 1, 2, 1>} : memref<1x16x128xf32, #tpu.memory_space<vmem>>, vector<1x8x128xf32>
    %17 = tpu.concatenate %15, %16 in 2 : vector<1x8x128xf32>, vector<1x8x128xf32> -> vector<1x8x256xf32>
    %18 = vector.shape_cast %17 : vector<1x8x256xf32> to vector<8x256xf32>
    %19 = arith.truncf %18 : vector<8x256xf32> to vector<8x256xbf16>
    %c0_17 = arith.constant 0 : index
    %c0_18 = arith.constant 0 : index
    %20 = vector.load %arg5[%c0_17, %c0_18] : memref<256x128xbf16, #tpu.memory_space<vmem>>, vector<256x128xbf16>
    %cst_19 = arith.constant dense<0.000000e+00> : vector<8x128xf32>
    %21 = tpu.matmul %19, %20, %cst_19 {dimension_numbers = #tpu.dot_dimension_numbers<[1], [0], [0], [1], [0, 0, 1, 1], [], []>} : vector<8x256xbf16>, vector<256x128xbf16>, vector<8x128xf32> -> vector<8x128xf32>
    %c0_20 = arith.constant 0 : index
    %c0_21 = arith.constant 0 : index
    %22 = vector.load %arg6[%c0_20, %c0_21] : memref<1x128xf32, #tpu.memory_space<vmem>>, vector<1x128xf32>
    %23 = vector.broadcast %22 : vector<1x128xf32> to vector<8x128xf32>
    %24 = arith.addf %21, %23 : vector<8x128xf32>
    %25 = vector.shape_cast %24 : vector<8x128xf32> to vector<1x8x128xf32>
    %c0_22 = arith.constant 0 : index
    %c0_23 = arith.constant 0 : index
    %c0_24 = arith.constant 0 : index
    %26 = vector.load %arg8[%c0_22, %c0_23, %c0_24] : memref<1x8x128xf32, #tpu.memory_space<vmem>>, vector<1x8x128xf32>
    tpu.vector_store %arg8[%c0_22, %c0_23, %c0_24], %25 {strides = array<i32>} : memref<1x8x128xf32, #tpu.memory_space<vmem>>, vector<1x8x128xf32>,
    return
  }
  func.func @transform_0(%arg0: i32) -> (i32, i32, i32) {
    %c0_i32 = arith.constant 0 : i32
    %c0_i32_0 = arith.constant 0 : i32
    %c0_i32_1 = arith.constant 0 : i32
    return %arg0, %c0_i32, %c0_i32_0 : i32, i32, i32
  }
  func.func @transform_1(%arg0: i32) -> (i32, i32, i32) {
    %c0_i32 = arith.constant 0 : i32
    %c0_i32_0 = arith.constant 0 : i32
    %c0_i32_1 = arith.constant 0 : i32
    return %arg0, %c0_i32, %c0_i32_0 : i32, i32, i32
  }
  func.func @transform_2(%arg0: i32) -> (i32, i32) {
    %c0_i32 = arith.constant 0 : i32
    %c0_i32_0 = arith.constant 0 : i32
    %c0_i32_1 = arith.constant 0 : i32
    return %c0_i32, %c0_i32_0 : i32, i32
  }
  func.func @transform_3(%arg0: i32) -> (i32, i32) {
    %c0_i32 = arith.constant 0 : i32
    %c0_i32_0 = arith.constant 0 : i32
    %c0_i32_1 = arith.constant 0 : i32
    return %c0_i32, %c0_i32_0 : i32, i32
  }
  func.func @transform_4(%arg0: i32) -> (i32, i32) {
    %c0_i32 = arith.constant 0 : i32
    %c0_i32_0 = arith.constant 0 : i32
    %c0_i32_1 = arith.constant 0 : i32
    return %c0_i32, %c0_i32_0 : i32, i32
  }
  func.func @transform_5(%arg0: i32) -> (i32, i32) {
    %c0_i32 = arith.constant 0 : i32
    %c0_i32_0 = arith.constant 0 : i32
    %c0_i32_1 = arith.constant 0 : i32
    return %c0_i32, %c0_i32_0 : i32, i32
  }
  func.func @transform_6(%arg0: i32) -> (i32, i32, i32) {
    %c0_i32 = arith.constant 0 : i32
    %c0_i32_0 = arith.constant 0 : i32
    %c0_i32_1 = arith.constant 0 : i32
    return %arg0, %c0_i32, %c0_i32_0 : i32, i32, i32
  }
  func.func @transform_7(%arg0: i32) -> (i32, i32, i32) {
    %c0_i32 = arith.constant 0 : i32
    %c0_i32_0 = arith.constant 0 : i32
    %c0_i32_1 = arith.constant 0 : i32
    return %arg0, %c0_i32, %c0_i32_0 : i32, i32, i32
  }
}

</mosaic_0001>

<llo_original>
// kernel: residual_block.3
$region0: #{residual_block.3}
  #allocation0 [shape = 'u32[]', space=smem, size = 0x4, offset = 0x4, fixed_abs, tag = 'smem constant byte address 0x4 - core index']
  #allocation1 [shape = 'u32[72,128]{1,0:T(1,128)}', space=vmem, size = 0x9000, scoped, tag = 'internal scratch']
  %s0 = inlined_call_operand.vmem [shape: f32[2,16,128], index: 0, kind: input, shape index: {}]
  %s1 = inlined_call_operand.vmem [shape: bf16[384,128], index: 1, kind: input, shape index: {}]
  %s2 = inlined_call_operand.vmem [shape: f32[1,128], index: 2, kind: input, shape index: {}]
  %s3 = inlined_call_operand.vmem [shape: bf16[2,16,128], index: 3, kind: output, shape index: {0}]
  %s4 = inlined_call_operand.vmem [shape: f32[2,2,128], index: 4, kind: output, shape index: {1}]
  %5 = xla_tuple %s3, %s4
  %s6 = sld [smem:[#allocation0]]
  $region53: #{residual_block.3} parent=0
    _
  %s8 = ssub.s32 1, %s6
  %s9 = scalar_select 0, %s8, %s6
  loop: start=0, step=1, limit=4
  $region2: #{residual_block.3} parent=0 // loop_pre_header
    _
  $region3: #{residual_block.3} parent=0 // loop_header
    %s11 = sphi 0, %s15
    %p12 = scmp.ge.s32.totalorder %s11, 4
    %s21 = sphi 0, %s23
    %s24 = sphi 0, %s21
    %s25 = sphi 0, %s24
    %s41 = sphi 0, %s25
    %s45 = sphi 0, %s45
    %s47 = sphi 0, %s45
    %s48 = sphi 0, %s47
    %s62 = sphi 0, %s48
    %s66 = sphi 0, %s66
    %s68 = sphi 0, %s66
    %s69 = sphi 0, %s68
    %s83 = sphi 0, %s69
    %s89 = sphi 0, %s91
    %s92 = sphi 0, %s89
    %s93 = sphi 0, %s92
    %s109 = sphi 0, %s93
    %s115 = sphi 0, %s117
    %s118 = sphi 0, %s115
    %s119 = sphi 0, %s118
    %s135 = sphi 0, %s119
  $region4: #{residual_block.3} parent=0 // loop_header_branch
    %14 = sbr.rel (%p12) target = $region8
  $region5: #{residual_block.3} parent=0 // loop_body
    %s16 = ssub.s32 %s11, 1
    %s17 = ssub.s32 %s11, 2
    %s18 = sadd.s32 %s11, 1
    %s19 = ssub.s32 %s11, %s18
    %p20 = scmp.eq.s32.totalorder %s19, 0
    %s22 = sadd.s32 %s21, 1
    %s23 = scalar_select %p20, %s21, %s22
    %p26 = pneg %p20
    %p27 = scmp.eq.s32.totalorder %s11, 1
    %p28 = por %p26, %p27
    %p29 = scmp.ne.s32.totalorder %s21, %s24
    %p30 = scmp.eq.s32.totalorder %s11, 0
    %p31 = por %p29, %p30
    %p32 = scmp.ne.s32.totalorder %s21, %s24
    %p33 = scmp.eq.s32.totalorder %s16, 1
    %p34 = por %p32, %p33
    %p35 = scmp.ne.s32.totalorder %s24, %s25
    %p36 = scmp.eq.s32.totalorder %s16, 0
    %p37 = por %p35, %p36
    %p38 = scmp.ne.s32.totalorder %s24, %s25
    %p39 = scmp.eq.s32.totalorder %s17, 1
    %p40 = por %p38, %p39
    %p42 = scmp.ne.s32.totalorder %s25, %s41
    %p43 = scmp.eq.s32.totalorder %s17, 0
    %p44 = por %p42, %p43
    %s46 = sadd.s32 %s45, 1
    %p49 = scmp.eq.s32.totalorder %s11, 1
    %p50 = scmp.ne.s32.totalorder %s45, %s47
    %p51 = scmp.eq.s32.totalorder %s11, 0
    %p52 = por %p50, %p51
    %p53 = scmp.ne.s32.totalorder %s45, %s47
    %p54 = scmp.eq.s32.totalorder %s16, 1
    %p55 = por %p53, %p54
    %p56 = scmp.ne.s32.totalorder %s47, %s48
    %p57 = scmp.eq.s32.totalorder %s16, 0
    %p58 = por %p56, %p57
    %p59 = scmp.ne.s32.totalorder %s47, %s48
    %p60 = scmp.eq.s32.totalorder %s17, 1
    %p61 = por %p59, %p60
    %p63 = scmp.ne.s32.totalorder %s48, %s62
    %p64 = scmp.eq.s32.totalorder %s17, 0
    %p65 = por %p63, %p64
    %s67 = sadd.s32 %s66, 1
    %p70 = scmp.eq.s32.totalorder %s11, 1
    %p71 = scmp.ne.s32.totalorder %s66, %s68
    %p72 = scmp.eq.s32.totalorder %s11, 0
    %p73 = por %p71, %p72
    %p74 = scmp.ne.s32.totalorder %s66, %s68
    %p75 = scmp.eq.s32.totalorder %s16, 1
    %p76 = por %p74, %p75
    %p77 = scmp.ne.s32.totalorder %s68, %s69
    %p78 = scmp.eq.s32.totalorder %s16, 0
    %p79 = por %p77, %p78
    %p80 = scmp.ne.s32.totalorder %s68, %s69
    %p81 = scmp.eq.s32.totalorder %s17, 1
    %p82 = por %p80, %p81
    %p84 = scmp.ne.s32.totalorder %s69, %s83
    %p85 = scmp.eq.s32.totalorder %s17, 0
    %p86 = por %p84, %p85
    %s87 = ssub.s32 %s11, %s18
    %p88 = scmp.eq.s32.totalorder %s87, 0
    %s90 = sadd.s32 %s89, 1
    %s91 = scalar_select %p88, %s89, %s90
    %p94 = pneg %p88
    %p95 = scmp.eq.s32.totalorder %s11, 1
    %p96 = por %p94, %p95
    %p97 = scmp.ne.s32.totalorder %s89, %s92
    %p98 = scmp.eq.s32.totalorder %s11, 0
    %p99 = por %p97, %p98
    %p100 = scmp.ne.s32.totalorder %s89, %s92
    %p101 = scmp.eq.s32.totalorder %s16, 1
    %p102 = por %p100, %p101
    %p103 = scmp.ne.s32.totalorder %s92, %s93
    %p104 = scmp.eq.s32.totalorder %s16, 0
    %p105 = por %p103, %p104
    %p106 = scmp.ne.s32.totalorder %s92, %s93
    %p107 = scmp.eq.s32.totalorder %s17, 1
    %p108 = por %p106, %p107
    %p110 = scmp.ne.s32.totalorder %s93, %s109
    %p111 = scmp.eq.s32.totalorder %s17, 0
    %p112 = por %p110, %p111
    %s113 = ssub.s32 %s11, %s18
    %p114 = scmp.eq.s32.totalorder %s113, 0
    %s116 = sadd.s32 %s115, 1
    %s117 = scalar_select %p114, %s115, %s116
    %p120 = pneg %p114
    %p121 = scmp.eq.s32.totalorder %s11, 1
    %p122 = por %p120, %p121
    %p123 = scmp.ne.s32.totalorder %s115, %s118
    %p124 = scmp.eq.s32.totalorder %s11, 0
    %p125 = por %p123, %p124
    %p126 = scmp.ne.s32.totalorder %s115, %s118
    %p127 = scmp.eq.s32.totalorder %s16, 1
    %p128 = por %p126, %p127
    %p129 = scmp.ne.s32.totalorder %s118, %s119
    %p130 = scmp.eq.s32.totalorder %s16, 0
    %p131 = por %p129, %p130
    %p132 = scmp.ne.s32.totalorder %s118, %s119
    %p133 = scmp.eq.s32.totalorder %s17, 1
    %p134 = por %p132, %p133
    %p136 = scmp.ne.s32.totalorder %s119, %s135
    %p137 = scmp.eq.s32.totalorder %s17, 0
    %p138 = por %p136, %p137
    %p139 = scmp.le.s32.totalorder 1, %s11
    %p140 = scmp.lt.s32.totalorder %s11, 3
    %p141 = pnand %p139, %p140
    %p142 = pneg %p141
    // Predicated region
    $region9: #{residual_block.3} parent=5 // pred_check
      _
    $region10: #{residual_block.3} parent=5 // pred_check_branch
      %144 = sbr.rel (%p141) target = $region12
    $region11: #{residual_block.3} parent=5 // pred_region
      %s145 = ssub.s32 %s11, 1
      // Predicated region
      $region13: #{residual_block.3} parent=11 // pred_check
        %p146 = pneg %p58
      $region14: #{residual_block.3} parent=11 // pred_check_branch
        %148 = sbr.rel (%p146) target = $region16
      $region15: #{residual_block.3} parent=11 // pred_region
        _
      $region16: #{residual_block.3} parent=11 // pred_fallthru
        _
      // Predicated region
      $region17: #{residual_block.3} parent=11 // pred_check
        %p149 = pneg %p79
      $region18: #{residual_block.3} parent=11 // pred_check_branch
        %151 = sbr.rel (%p149) target = $region20
      $region19: #{residual_block.3} parent=11 // pred_region
        _
      $region20: #{residual_block.3} parent=11 // pred_fallthru
        _
    $region12: #{residual_block.3} parent=5 // pred_fallthru
      _
    %p152 = scmp.lt.s32.totalorder %s11, 2
    // Predicated region
    $region21: #{residual_block.3} parent=5 // pred_check
      %p153 = pneg %p152
    $region22: #{residual_block.3} parent=5 // pred_check_branch
      %155 = sbr.rel (%p153) target = $region24
    $region23: #{residual_block.3} parent=5 // pred_region
      // Predicated region
      $region25: #{residual_block.3} parent=23 // pred_check
        %p156 = pneg %p31
      $region26: #{residual_block.3} parent=23 // pred_check_branch
        %158 = sbr.rel (%p156) target = $region28
      $region27: #{residual_block.3} parent=23 // pred_region
        %p159 = scmp.lt.s32.totalorder %s11, 1
        %s160 = scalar_select %p159, %s11, 1
        %s161 = smul.addr %s160, 2
        %s162 = smul.addr %s161, 8
        %s163 = scalar_lea.vmem %s0, %s162
      $region28: #{residual_block.3} parent=23 // pred_fallthru
        _
    $region24: #{residual_block.3} parent=5 // pred_fallthru
      _
    %p164 = scmp.le.s32.totalorder 1, %s11
    %p165 = scmp.lt.s32.totalorder %s11, 3
    %p166 = pnand %p164, %p165
    %p167 = pneg %p166
    // Predicated region
    $region29: #{residual_block.3} parent=5 // pred_check
      _
    $region30: #{residual_block.3} parent=5 // pred_check_branch
      %169 = sbr.rel (%p166) target = $region32
    $region31: #{residual_block.3} parent=5 // pred_region
      %s170 = ssub.s32 %s11, 1
      %p171 = scmp.lt.s32.totalorder %s16, 1
      %s172 = scalar_select %p171, %s16, 1
      %s173 = smul.addr %s172, 2
      %s174 = smul.addr %s173, 8
      %s175 = scalar_lea.vmem %s0, %s174
      %p176 = pneg %p37
      %p177 = pneg %p34
      %p178 = pneg %p58
      %p179 = pneg %p55
      %p180 = pneg %p79
      %p181 = pneg %p76
      %p182 = pneg %p105
      %p183 = pneg %p102
      %p184 = scmp.lt.s32.totalorder %s16, 1
      %s185 = scalar_select %p184, %s16, 1
      %s186 = smul.addr %s185, 2
      %s187 = smul.addr %s186, 4
      %s188 = scalar_lea.vmem %s3, %s187
      %p189 = pneg %p131
      %p190 = pneg %p128
      %p191 = scmp.lt.s32.totalorder %s16, 1
      %s192 = scalar_select %p191, %s16, 1
      %s193 = smul.addr %s192, 2
      %s194 = scalar_lea.vmem %s4, %s193
      %p195 = scmp.lt.s32.totalorder %s16, 1
      %s196 = scalar_select %p195, %s16, 1
      %s197 = smul.addr %s196, 2
      %s198 = smul.addr %s197, 8
      %s199 = scalar_lea.vmem %s0, %s198
      %p200 = scmp.lt.s32.totalorder %s16, 1
      %s201 = scalar_select %p200, %s16, 1
      %s202 = smul.addr %s201, 2
      %s203 = smul.addr %s202, 4
      %s204 = scalar_lea.vmem %s3, %s203
      %p205 = scmp.lt.s32.totalorder %s16, 1
      %s206 = scalar_select %p205, %s16, 1
      %s207 = smul.addr %s206, 2
      %s208 = scalar_lea.vmem %s4, %s207
      %v209 = vld [vmem:[%s199] sm:$0xff]
      %v210 = vld [vmem:[%s199 + $0x8] sm:$0xff]
      %vm213 = vcmask 1040384
      %v214 = vrot.slane %v209, 7
      %v215 = vrot.slane %v210, 7
      %v216 = vsel %vm213, %v214, %v215
      %v219 = vsel %vm213, 0.0, %v214
      %vm220 = vcmask 1046528
      %v221 = vrot.slane %v209, 1
      %v222 = vrot.slane %v210, 1
      %v223 = vsel %vm220, %v221, %v222
      %v226 = vsel %vm220, %v222, 0.0
      %v227 = vpack.c.bf16 %v216, %v219
      %v228 = vpack.c.bf16 %v210, %v209
      %v229 = vpack.c.bf16 %v226, %v223
      %v230 = vld [vmem:[%s1] sm:$0xf]
      %v231 = vld [vmem:[%s1 + $0x4] sm:$0xf]
      %v232 = vld [vmem:[%s1 + $0x8] sm:$0xf]
      %v233 = vld [vmem:[%s1 + $0xc] sm:$0xf]
      %v234 = vld [vmem:[%s1 + $0x10] sm:$0xf]
      %v235 = vld [vmem:[%s1 + $0x14] sm:$0xf]
      %v236 = vld [vmem:[%s1 + $0x18] sm:$0xf]
      %v237 = vld [vmem:[%s1 + $0x1c] sm:$0xf]
      %v238 = vld [vmem:[%s1 + $0x20] sm:$0xf]
      %v239 = vld [vmem:[%s1 + $0x24] sm:$0xf]
      %v240 = vld [vmem:[%s1 + $0x28] sm:$0xf]
      %v241 = vld [vmem:[%s1 + $0x2c] sm:$0xf]
      %v242 = vld [vmem:[%s1 + $0x30] sm:$0xf]
      %v243 = vld [vmem:[%s1 + $0x34] sm:$0xf]
      %v244 = vld [vmem:[%s1 + $0x38] sm:$0xf]
      %v245 = vld [vmem:[%s1 + $0x3c] sm:$0xf]
      %v246 = vld [vmem:[%s1 + $0x40] sm:$0xf]
      %v247 = vld [vmem:[%s1 + $0x44] sm:$0xf]
      %v248 = vld [vmem:[%s1 + $0x48] sm:$0xf]
      %v249 = vld [vmem:[%s1 + $0x4c] sm:$0xf]
      %v250 = vld [vmem:[%s1 + $0x50] sm:$0xf]
      %v251 = vld [vmem:[%s1 + $0x54] sm:$0xf]
      %v252 = vld [vmem:[%s1 + $0x58] sm:$0xf]
      %v253 = vld [vmem:[%s1 + $0x5c] sm:$0xf]
      %v254 = vld [vmem:[%s1 + $0x60] sm:$0xf]
      %v255 = vld [vmem:[%s1 + $0x64] sm:$0xf]
      %v256 = vld [vmem:[%s1 + $0x68] sm:$0xf]
      %v257 = vld [vmem:[%s1 + $0x6c] sm:$0xf]
      %v258 = vld [vmem:[%s1 + $0x70] sm:$0xf]
      %v259 = vld [vmem:[%s1 + $0x74] sm:$0xf]
      %v260 = vld [vmem:[%s1 + $0x78] sm:$0xf]
      %v261 = vld [vmem:[%s1 + $0x7c] sm:$0xf]
      %v262 = vld [vmem:[%s1 + $0x80] sm:$0xf]
      %v263 = vld [vmem:[%s1 + $0x84] sm:$0xf]
      %v264 = vld [vmem:[%s1 + $0x88] sm:$0xf]
      %v265 = vld [vmem:[%s1 + $0x8c] sm:$0xf]
      %v266 = vld [vmem:[%s1 + $0x90] sm:$0xf]
      %v267 = vld [vmem:[%s1 + $0x94] sm:$0xf]
      %v268 = vld [vmem:[%s1 + $0x98] sm:$0xf]
      %v269 = vld [vmem:[%s1 + $0x9c] sm:$0xf]
      %v270 = vld [vmem:[%s1 + $0xa0] sm:$0xf]
      %v271 = vld [vmem:[%s1 + $0xa4] sm:$0xf]
      %v272 = vld [vmem:[%s1 + $0xa8] sm:$0xf]
      %v273 = vld [vmem:[%s1 + $0xac] sm:$0xf]
      %v274 = vld [vmem:[%s1 + $0xb0] sm:$0xf]
      %v275 = vld [vmem:[%s1 + $0xb4] sm:$0xf]
      %v276 = vld [vmem:[%s1 + $0xb8] sm:$0xf]
      %v277 = vld [vmem:[%s1 + $0xbc] sm:$0xf]
      %v278 = vld [vmem:[%s2] sm:$0x1]
      %v280 = vperm.slane %v278, 0
      %v330 = vunpack.c.l.b16 %v230
      %v331 = vunpack.c.l.b16 %v231
      %v332 = vunpack.c.l.b16 %v232
      %v333 = vunpack.c.l.b16 %v233
      %v334 = vunpack.c.l.b16 %v234
      %v335 = vunpack.c.l.b16 %v235
      %v336 = vunpack.c.l.b16 %v236
      %v337 = vunpack.c.l.b16 %v237
      %v338 = vunpack.c.l.b16 %v238
      %v339 = vunpack.c.l.b16 %v239
      %v340 = vunpack.c.l.b16 %v240
      %v341 = vunpack.c.l.b16 %v241
      %v342 = vunpack.c.l.b16 %v242
      %v343 = vunpack.c.l.b16 %v243
      %v344 = vunpack.c.l.b16 %v244
      %v345 = vunpack.c.l.b16 %v245
      %v346 = vunpack.c.l.b16 %v246
      %v347 = vunpack.c.l.b16 %v247
      %v348 = vunpack.c.l.b16 %v248
      %v349 = vunpack.c.l.b16 %v249
      %v350 = vunpack.c.l.b16 %v250
      %v351 = vunpack.c.l.b16 %v251
      %v352 = vunpack.c.l.b16 %v252
      %v353 = vunpack.c.l.b16 %v253
      %v354 = vunpack.c.l.b16 %v254
      %v355 = vunpack.c.l.b16 %v255
      %v356 = vunpack.c.l.b16 %v256
      %v357 = vunpack.c.l.b16 %v257
      %v358 = vunpack.c.l.b16 %v258
      %v359 = vunpack.c.l.b16 %v259
      %v360 = vunpack.c.l.b16 %v260
      %v361 = vunpack.c.l.b16 %v261
      %v362 = vunpack.c.l.b16 %v262
      %v363 = vunpack.c.l.b16 %v263
      %v364 = vunpack.c.l.b16 %v264
      %v365 = vunpack.c.l.b16 %v265
      %v366 = vunpack.c.l.b16 %v266
      %v367 = vunpack.c.l.b16 %v267
      %v368 = vunpack.c.l.b16 %v268
      %v369 = vunpack.c.l.b16 %v269
      %v370 = vunpack.c.l.b16 %v270
      %v371 = vunpack.c.l.b16 %v271
      %v372 = vunpack.c.l.b16 %v272
      %v373 = vunpack.c.l.b16 %v273
      %v374 = vunpack.c.l.b16 %v274
      %v375 = vunpack.c.l.b16 %v275
      %v376 = vunpack.c.l.b16 %v276
      %v377 = vunpack.c.l.b16 %v277
      %v378 = vpack.c.b16 %v331, %v330
      %v379 = vpack.c.b16 %v333, %v332
      %v380 = vpack.c.b16 %v335, %v334
      %v381 = vpack.c.b16 %v337, %v336
      %v382 = vpack.c.b16 %v339, %v338
      %v383 = vpack.c.b16 %v341, %v340
      %v384 = vpack.c.b16 %v343, %v342
      %v385 = vpack.c.b16 %v345, %v344
      %v386 = vpack.c.b16 %v347, %v346
      %v387 = vpack.c.b16 %v349, %v348
      %v388 = vpack.c.b16 %v351, %v350
      %v389 = vpack.c.b16 %v353, %v352
      %v390 = vpack.c.b16 %v355, %v354
      %v391 = vpack.c.b16 %v357, %v356
      %v392 = vpack.c.b16 %v359, %v358
      %v393 = vpack.c.b16 %v361, %v360
      %v394 = vpack.c.b16 %v363, %v362
      %v395 = vpack.c.b16 %v365, %v364
      %v396 = vpack.c.b16 %v367, %v366
      %v397 = vpack.c.b16 %v369, %v368
      %v398 = vpack.c.b16 %v371, %v370
      %v399 = vpack.c.b16 %v373, %v372
      %v400 = vpack.c.b16 %v375, %v374
      %v401 = vpack.c.b16 %v377, %v376
      %426 = vmatpush.bf16.msra.mxu0 %v385
      %427 = vmatpush.bf16.msra.mxu0 %v384
      %428 = vmatpush.bf16.msra.mxu0 %v383
      %429 = vmatpush.bf16.msra.mxu0 %v382
      %430 = vmatpush.bf16.msra.mxu0 %v381
      %431 = vmatpush.bf16.msra.mxu0 %v380
      %432 = vmatpush.bf16.msra.mxu0 %v379
      %433 = vmatpush.bf16.msra.mxu0 %v378
      %434 = vmatmul.bf16.gmra.mxu0 %v227
      %v435 = vpop.f32.mrf.mxu0
      %v436 = vadd.f32 %v280, %v435
      %v437 = vpop.f32.mrf.mxu0
      %v438 = vadd.f32 %v280, %v437
      %439 = vdwg.mxu0
      %440 = vmatpush.bf16.msra.mxu0 %v393
      %441 = vmatpush.bf16.msra.mxu0 %v392
      %442 = vmatpush.bf16.msra.mxu0 %v391
      %443 = vmatpush.bf16.msra.mxu0 %v390
      %444 = vmatpush.bf16.msra.mxu0 %v389
      %445 = vmatpush.bf16.msra.mxu0 %v388
      %446 = vmatpush.bf16.msra.mxu0 %v387
      %447 = vmatpush.bf16.msra.mxu0 %v386
      %448 = vmatmul.bf16.gmra.mxu0 %v228
      %v449 = vpop.f32.mrf.mxu0
      %v450 = vadd.f32 %v436, %v449
      %v451 = vpop.f32.mrf.mxu0
      %v452 = vadd.f32 %v438, %v451
      %453 = vdwg.mxu0
      %454 = vmatpush.bf16.msra.mxu0 %v401
      %455 = vmatpush.bf16.msra.mxu0 %v400
      %456 = vmatpush.bf16.msra.mxu0 %v399
      %457 = vmatpush.bf16.msra.mxu0 %v398
      %458 = vmatpush.bf16.msra.mxu0 %v397
      %459 = vmatpush.bf16.msra.mxu0 %v396
      %460 = vmatpush.bf16.msra.mxu0 %v395
      %461 = vmatpush.bf16.msra.mxu0 %v394
      %462 = vmatmul.bf16.gmra.mxu0 %v229
      %v463 = vpop.f32.mrf.mxu0
      %v464 = vadd.f32 %v450, %v463
      %v465 = vpop.f32.mrf.mxu0
      %v466 = vadd.f32 %v452, %v465
      %467 = vdwg.mxu0
      %v468 = vpack.c.bf16 %v464, %v464
      %v469 = vpack.c.bf16 %v466, %v466
      %470 = vst [vmem:[%s204] sm:$0xf] %v468
      %471 = vst [vmem:[%s204 + $0x4] sm:$0xf] %v469
      %v472 = vunpack.c.l.bf16 %v468
      %v473 = vunpack.c.l.bf16 %v469
      %v474 = vadd.f32 %v472, %v473
      %v475 = vrot.slane %v474, 4
      %v476 = vadd.f32 %v474, %v475
      %v477 = vrot.slane %v476, 2
      %v478 = vadd.f32 %v476, %v477
      %v479 = vrot.slane %v478, 1
      %v480 = vadd.f32 %v478, %v479
      %v481 = vmul.f32 %v472, %v472
      %v482 = vmul.f32 %v473, %v473
      %v483 = vadd.f32 %v481, %v482
      %v484 = vrot.slane %v483, 4
      %v485 = vadd.f32 %v483, %v484
      %v486 = vrot.slane %v485, 2
      %v487 = vadd.f32 %v485, %v486
      %v488 = vrot.slane %v487, 1
      %v489 = vadd.f32 %v487, %v488
      %v490 = vsel %vm213, %v480, %v489
      %491 = vst [vmem:[%s208] sm:$0x3] %v490
      %p492 = scmp.lt.s32.totalorder %s16, 1
      %s493 = scalar_select %p492, %s16, 1
      %s494 = smul.addr %s493, 2
      %s495 = smul.addr %s494, 4
      %s496 = scalar_lea.vmem %s3, %s495
      %p497 = scmp.lt.s32.totalorder %s16, 1
      %s498 = scalar_select %p497, %s16, 1
      %s499 = smul.addr %s498, 2
      %s500 = scalar_lea.vmem %s4, %s499
      // Predicated region
      $region33: #{residual_block.3} parent=31 // pred_check
        %p501 = pneg %p102
      $region34: #{residual_block.3} parent=31 // pred_check_branch
        %503 = sbr.rel (%p501) target = $region36
      $region35: #{residual_block.3} parent=31 // pred_region
        _
      $region36: #{residual_block.3} parent=31 // pred_fallthru
        _
      // Predicated region
      $region37: #{residual_block.3} parent=31 // pred_check
        %p504 = pneg %p128
      $region38: #{residual_block.3} parent=31 // pred_check_branch
        %506 = sbr.rel (%p504) target = $region40
      $region39: #{residual_block.3} parent=31 // pred_region
        _
      $region40: #{residual_block.3} parent=31 // pred_fallthru
        _
    $region32: #{residual_block.3} parent=5 // pred_fallthru
      _
    %p507 = scmp.le.s32.totalorder 2, %s11
    // Predicated region
    $region41: #{residual_block.3} parent=5 // pred_check
      %p508 = pneg %p507
    $region42: #{residual_block.3} parent=5 // pred_check_branch
      %510 = sbr.rel (%p508) target = $region44
    $region43: #{residual_block.3} parent=5 // pred_region
      %s511 = ssub.s32 %s11, 2
      // Predicated region
      $region45: #{residual_block.3} parent=43 // pred_check
        %p512 = pneg %p108
      $region46: #{residual_block.3} parent=43 // pred_check_branch
        %514 = sbr.rel (%p512) target = $region48
      $region47: #{residual_block.3} parent=43 // pred_region
        %p515 = scmp.lt.s32.totalorder %s17, 1
        %s516 = scalar_select %p515, %s17, 1
        %s517 = smul.addr %s516, 2
        %s518 = smul.addr %s517, 4
        %s519 = scalar_lea.vmem %s3, %s518
      $region48: #{residual_block.3} parent=43 // pred_fallthru
        _
      // Predicated region
      $region49: #{residual_block.3} parent=43 // pred_check
        %p520 = pneg %p134
      $region50: #{residual_block.3} parent=43 // pred_check_branch
        %522 = sbr.rel (%p520) target = $region52
      $region51: #{residual_block.3} parent=43 // pred_region
        %p523 = scmp.lt.s32.totalorder %s17, 1
        %s524 = scalar_select %p523, %s17, 1
        %s525 = smul.addr %s524, 2
        %s526 = scalar_lea.vmem %s4, %s525
      $region52: #{residual_block.3} parent=43 // pred_fallthru
        _
    $region44: #{residual_block.3} parent=5 // pred_fallthru
      _
  $region6: #{residual_block.3} parent=0 // loop_footer
    %s15 = sadd.s32 1, %s11
  $region7: #{residual_block.3} parent=0 // loop_footer_branch
    %10 = sbr.rel target = $region3
  $region8: #{residual_block.3} parent=0 // loop_exit
    _

// kernel: residual_block.4
$region0: #{residual_block.4}
  #allocation0 [shape = 'u32[]', space=smem, size = 0x4, offset = 0x4, fixed_abs, tag = 'smem constant byte address 0x4 - core index']
  #allocation1 [shape = 'u32[72,128]{1,0:T(1,128)}', space=vmem, size = 0x9000, scoped, tag = 'internal scratch']
  %s0 = inlined_call_operand.vmem [shape: bf16[2,16,128], index: 0, kind: input, shape index: {}]
  %s1 = inlined_call_operand.vmem [shape: f32[1,128], index: 1, kind: input, shape index: {}]
  %s2 = inlined_call_operand.vmem [shape: f32[1,128], index: 2, kind: input, shape index: {}]
  %s3 = inlined_call_operand.vmem [shape: bf16[384,128], index: 3, kind: input, shape index: {}]
  %s4 = inlined_call_operand.vmem [shape: f32[1,128], index: 4, kind: input, shape index: {}]
  %s5 = inlined_call_operand.vmem [shape: bf16[2,16,128], index: 5, kind: output, shape index: {0}]
  %s6 = inlined_call_operand.vmem [shape: f32[2,2,128], index: 6, kind: output, shape index: {1}]
  %7 = xla_tuple %s5, %s6
  %s8 = sld [smem:[#allocation0]]
  $region61: #{residual_block.4} parent=0
    _
  %s10 = ssub.s32 1, %s8
  %s11 = scalar_select 0, %s10, %s8
  loop: start=0, step=1, limit=4
  $region2: #{residual_block.4} parent=0 // loop_pre_header
    _
  $region3: #{residual_block.4} parent=0 // loop_header
    %s13 = sphi 0, %s17
    %p14 = scmp.ge.s32.totalorder %s13, 4
    %s23 = sphi 0, %s25
    %s26 = sphi 0, %s23
    %s27 = sphi 0, %s26
    %s43 = sphi 0, %s27
    %s47 = sphi 0, %s47
    %s49 = sphi 0, %s47
    %s50 = sphi 0, %s49
    %s64 = sphi 0, %s50
    %s68 = sphi 0, %s68
    %s70 = sphi 0, %s68
    %s71 = sphi 0, %s70
    %s85 = sphi 0, %s71
    %s89 = sphi 0, %s89
    %s91 = sphi 0, %s89
    %s92 = sphi 0, %s91
    %s106 = sphi 0, %s92
    %s110 = sphi 0, %s110
    %s112 = sphi 0, %s110
    %s113 = sphi 0, %s112
    %s127 = sphi 0, %s113
    %s133 = sphi 0, %s135
    %s136 = sphi 0, %s133
    %s137 = sphi 0, %s136
    %s153 = sphi 0, %s137
    %s159 = sphi 0, %s161
    %s162 = sphi 0, %s159
    %s163 = sphi 0, %s162
    %s179 = sphi 0, %s163
  $region4: #{residual_block.4} parent=0 // loop_header_branch
    %16 = sbr.rel (%p14) target = $region8
  $region5: #{residual_block.4} parent=0 // loop_body
    %s18 = ssub.s32 %s13, 1
    %s19 = ssub.s32 %s13, 2
    %s20 = sadd.s32 %s13, 1
    %s21 = ssub.s32 %s13, %s20
    %p22 = scmp.eq.s32.totalorder %s21, 0
    %s24 = sadd.s32 %s23, 1
    %s25 = scalar_select %p22, %s23, %s24
    %p28 = pneg %p22
    %p29 = scmp.eq.s32.totalorder %s13, 1
    %p30 = por %p28, %p29
    %p31 = scmp.ne.s32.totalorder %s23, %s26
    %p32 = scmp.eq.s32.totalorder %s13, 0
    %p33 = por %p31, %p32
    %p34 = scmp.ne.s32.totalorder %s23, %s26
    %p35 = scmp.eq.s32.totalorder %s18, 1
    %p36 = por %p34, %p35
    %p37 = scmp.ne.s32.totalorder %s26, %s27
    %p38 = scmp.eq.s32.totalorder %s18, 0
    %p39 = por %p37, %p38
    %p40 = scmp.ne.s32.totalorder %s26, %s27
    %p41 = scmp.eq.s32.totalorder %s19, 1
    %p42 = por %p40, %p41
    %p44 = scmp.ne.s32.totalorder %s27, %s43
    %p45 = scmp.eq.s32.totalorder %s19, 0
    %p46 = por %p44, %p45
    %s48 = sadd.s32 %s47, 1
    %p51 = scmp.eq.s32.totalorder %s13, 1
    %p52 = scmp.ne.s32.totalorder %s47, %s49
    %p53 = scmp.eq.s32.totalorder %s13, 0
    %p54 = por %p52, %p53
    %p55 = scmp.ne.s32.totalorder %s47, %s49
    %p56 = scmp.eq.s32.totalorder %s18, 1
    %p57 = por %p55, %p56
    %p58 = scmp.ne.s32.totalorder %s49, %s50
    %p59 = scmp.eq.s32.totalorder %s18, 0
    %p60 = por %p58, %p59
    %p61 = scmp.ne.s32.totalorder %s49, %s50
    %p62 = scmp.eq.s32.totalorder %s19, 1
    %p63 = por %p61, %p62
    %p65 = scmp.ne.s32.totalorder %s50, %s64
    %p66 = scmp.eq.s32.totalorder %s19, 0
    %p67 = por %p65, %p66
    %s69 = sadd.s32 %s68, 1
    %p72 = scmp.eq.s32.totalorder %s13, 1
    %p73 = scmp.ne.s32.totalorder %s68, %s70
    %p74 = scmp.eq.s32.totalorder %s13, 0
    %p75 = por %p73, %p74
    %p76 = scmp.ne.s32.totalorder %s68, %s70
    %p77 = scmp.eq.s32.totalorder %s18, 1
    %p78 = por %p76, %p77
    %p79 = scmp.ne.s32.totalorder %s70, %s71
    %p80 = scmp.eq.s32.totalorder %s18, 0
    %p81 = por %p79, %p80
    %p82 = scmp.ne.s32.totalorder %s70, %s71
    %p83 = scmp.eq.s32.totalorder %s19, 1
    %p84 = por %p82, %p83
    %p86 = scmp.ne.s32.totalorder %s71, %s85
    %p87 = scmp.eq.s32.totalorder %s19, 0
    %p88 = por %p86, %p87
    %s90 = sadd.s32 %s89, 1
    %p93 = scmp.eq.s32.totalorder %s13, 1
    %p94 = scmp.ne.s32.totalorder %s89, %s91
    %p95 = scmp.eq.s32.totalorder %s13, 0
    %p96 = por %p94, %p95
    %p97 = scmp.ne.s32.totalorder %s89, %s91
    %p98 = scmp.eq.s32.totalorder %s18, 1
    %p99 = por %p97, %p98
    %p100 = scmp.ne.s32.totalorder %s91, %s92
    %p101 = scmp.eq.s32.totalorder %s18, 0
    %p102 = por %p100, %p101
    %p103 = scmp.ne.s32.totalorder %s91, %s92
    %p104 = scmp.eq.s32.totalorder %s19, 1
    %p105 = por %p103, %p104
    %p107 = scmp.ne.s32.totalorder %s92, %s106
    %p108 = scmp.eq.s32.totalorder %s19, 0
    %p109 = por %p107, %p108
    %s111 = sadd.s32 %s110, 1
    %p114 = scmp.eq.s32.totalorder %s13, 1
    %p115 = scmp.ne.s32.totalorder %s110, %s112
    %p116 = scmp.eq.s32.totalorder %s13, 0
    %p117 = por %p115, %p116
    %p118 = scmp.ne.s32.totalorder %s110, %s112
    %p119 = scmp.eq.s32.totalorder %s18, 1
    %p120 = por %p118, %p119
    %p121 = scmp.ne.s32.totalorder %s112, %s113
    %p122 = scmp.eq.s32.totalorder %s18, 0
    %p123 = por %p121, %p122
    %p124 = scmp.ne.s32.totalorder %s112, %s113
    %p125 = scmp.eq.s32.totalorder %s19, 1
    %p126 = por %p124, %p125
    %p128 = scmp.ne.s32.totalorder %s113, %s127
    %p129 = scmp.eq.s32.totalorder %s19, 0
    %p130 = por %p128, %p129
    %s131 = ssub.s32 %s13, %s20
    %p132 = scmp.eq.s32.totalorder %s131, 0
    %s134 = sadd.s32 %s133, 1
    %s135 = scalar_select %p132, %s133, %s134
    %p138 = pneg %p132
    %p139 = scmp.eq.s32.totalorder %s13, 1
    %p140 = por %p138, %p139
    %p141 = scmp.ne.s32.totalorder %s133, %s136
    %p142 = scmp.eq.s32.totalorder %s13, 0
    %p143 = por %p141, %p142
    %p144 = scmp.ne.s32.totalorder %s133, %s136
    %p145 = scmp.eq.s32.totalorder %s18, 1
    %p146 = por %p144, %p145
    %p147 = scmp.ne.s32.totalorder %s136, %s137
    %p148 = scmp.eq.s32.totalorder %s18, 0
    %p149 = por %p147, %p148
    %p150 = scmp.ne.s32.totalorder %s136, %s137
    %p151 = scmp.eq.s32.totalorder %s19, 1
    %p152 = por %p150, %p151
    %p154 = scmp.ne.s32.totalorder %s137, %s153
    %p155 = scmp.eq.s32.totalorder %s19, 0
    %p156 = por %p154, %p155
    %s157 = ssub.s32 %s13, %s20
    %p158 = scmp.eq.s32.totalorder %s157, 0
    %s160 = sadd.s32 %s159, 1
    %s161 = scalar_select %p158, %s159, %s160
    %p164 = pneg %p158
    %p165 = scmp.eq.s32.totalorder %s13, 1
    %p166 = por %p164, %p165
    %p167 = scmp.ne.s32.totalorder %s159, %s162
    %p168 = scmp.eq.s32.totalorder %s13, 0
    %p169 = por %p167, %p168
    %p170 = scmp.ne.s32.totalorder %s159, %s162
    %p171 = scmp.eq.s32.totalorder %s18, 1
    %p172 = por %p170, %p171
    %p173 = scmp.ne.s32.totalorder %s162, %s163
    %p174 = scmp.eq.s32.totalorder %s18, 0
    %p175 = por %p173, %p174
    %p176 = scmp.ne.s32.totalorder %s162, %s163
    %p177 = scmp.eq.s32.totalorder %s19, 1
    %p178 = por %p176, %p177
    %p180 = scmp.ne.s32.totalorder %s163, %s179
    %p181 = scmp.eq.s32.totalorder %s19, 0
    %p182 = por %p180, %p181
    %p183 = scmp.le.s32.totalorder 1, %s13
    %p184 = scmp.lt.s32.totalorder %s13, 3
    %p185 = pnand %p183, %p184
    %p186 = pneg %p185
    // Predicated region
    $region9: #{residual_block.4} parent=5 // pred_check
      _
    $region10: #{residual_block.4} parent=5 // pred_check_branch
      %188 = sbr.rel (%p185) target = $region12
    $region11: #{residual_block.4} parent=5 // pred_region
      %s189 = ssub.s32 %s13, 1
      // Predicated region
      $region13: #{residual_block.4} parent=11 // pred_check
        %p190 = pneg %p60
      $region14: #{residual_block.4} parent=11 // pred_check_branch
        %192 = sbr.rel (%p190) target = $region16
      $region15: #{residual_block.4} parent=11 // pred_region
        _
      $region16: #{residual_block.4} parent=11 // pred_fallthru
        _
      // Predicated region
      $region17: #{residual_block.4} parent=11 // pred_check
        %p193 = pneg %p81
      $region18: #{residual_block.4} parent=11 // pred_check_branch
        %195 = sbr.rel (%p193) target = $region20
      $region19: #{residual_block.4} parent=11 // pred_region
        _
      $region20: #{residual_block.4} parent=11 // pred_fallthru
        _
      // Predicated region
      $region21: #{residual_block.4} parent=11 // pred_check
        %p196 = pneg %p102
      $region22: #{residual_block.4} parent=11 // pred_check_branch
        %198 = sbr.rel (%p196) target = $region24
      $region23: #{residual_block.4} parent=11 // pred_region
        _
      $region24: #{residual_block.4} parent=11 // pred_fallthru
        _
      // Predicated region
      $region25: #{residual_block.4} parent=11 // pred_check
        %p199 = pneg %p123
      $region26: #{residual_block.4} parent=11 // pred_check_branch
        %201 = sbr.rel (%p199) target = $region28
      $region27: #{residual_block.4} parent=11 // pred_region
        _
      $region28: #{residual_block.4} parent=11 // pred_fallthru
        _
    $region12: #{residual_block.4} parent=5 // pred_fallthru
      _
    %p202 = scmp.lt.s32.totalorder %s13, 2
    // Predicated region
    $region29: #{residual_block.4} parent=5 // pred_check
      %p203 = pneg %p202
    $region30: #{residual_block.4} parent=5 // pred_check_branch
      %205 = sbr.rel (%p203) target = $region32
    $region31: #{residual_block.4} parent=5 // pred_region
      // Predicated region
      $region33: #{residual_block.4} parent=31 // pred_check
        %p206 = pneg %p33
      $region34: #{residual_block.4} parent=31 // pred_check_branch
        %208 = sbr.rel (%p206) target = $region36
      $region35: #{residual_block.4} parent=31 // pred_region
        %p209 = scmp.lt.s32.totalorder %s13, 1
        %s210 = scalar_select %p209, %s13, 1
        %s211 = smul.addr %s210, 2
        %s212 = smul.addr %s211, 4
        %s213 = scalar_lea.vmem %s0, %s212
      $region36: #{residual_block.4} parent=31 // pred_fallthru
        _
    $region32: #{residual_block.4} parent=5 // pred_fallthru
      _
    %p214 = scmp.le.s32.totalorder 1, %s13
    %p215 = scmp.lt.s32.totalorder %s13, 3
    %p216 = pnand %p214, %p215
    %p217 = pneg %p216
    // Predicated region
    $region37: #{residual_block.4} parent=5 // pred_check
      _
    $region38: #{residual_block.4} parent=5 // pred_check_branch
      %219 = sbr.rel (%p216) target = $region40
    $region39: #{residual_block.4} parent=5 // pred_region
      %s220 = ssub.s32 %s13, 1
      %p221 = scmp.lt.s32.totalorder %s18, 1
      %s222 = scalar_select %p221, %s18, 1
      %s223 = smul.addr %s222, 2
      %s224 = smul.addr %s223, 4
      %s225 = scalar_lea.vmem %s0, %s224
      %p226 = pneg %p39
      %p227 = pneg %p36
      %p228 = pneg %p60
      %p229 = pneg %p57
      %p230 = pneg %p81
      %p231 = pneg %p78
      %p232 = pneg %p102
      %p233 = pneg %p99
      %p234 = pneg %p123
      %p235 = pneg %p120
      %p236 = pneg %p149
      %p237 = pneg %p146
      %p238 = scmp.lt.s32.totalorder %s18, 1
      %s239 = scalar_select %p238, %s18, 1
      %s240 = smul.addr %s239, 2
      %s241 = smul.addr %s240, 4
      %s242 = scalar_lea.vmem %s5, %s241
      %p243 = pneg %p175
      %p244 = pneg %p172
      %p245 = scmp.lt.s32.totalorder %s18, 1
      %s246 = scalar_select %p245, %s18, 1
      %s247 = smul.addr %s246, 2
      %s248 = scalar_lea.vmem %s6, %s247
      %p249 = scmp.lt.s32.totalorder %s18, 1
      %s250 = scalar_select %p249, %s18, 1
      %s251 = smul.addr %s250, 2
      %s252 = smul.addr %s251, 4
      %s253 = scalar_lea.vmem %s0, %s252
      %p254 = scmp.lt.s32.totalorder %s18, 1
      %s255 = scalar_select %p254, %s18, 1
      %s256 = smul.addr %s255, 2
      %s257 = smul.addr %s256, 4
      %s258 = scalar_lea.vmem %s5, %s257
      %p259 = scmp.lt.s32.totalorder %s18, 1
      %s260 = scalar_select %p259, %s18, 1
      %s261 = smul.addr %s260, 2
      %s262 = scalar_lea.vmem %s6, %s261
      %v263 = vld [vmem:[%s253] sm:$0xf]
      %v264 = vld [vmem:[%s253 + $0x4] sm:$0xf]
      %v265 = vld [vmem:[%s1] sm:$0x1]
      %v266 = vunpack.c.l.bf16 %v263
      %v267 = vunpack.c.l.bf16 %v264
      %v269 = vperm.slane %v265, 0
      %v271 = vmul.f32 %v266, %v269
      %v272 = vmul.f32 %v267, %v269
      %v273 = vld [vmem:[%s2] sm:$0x1]
      %v275 = vperm.slane %v273, 0
      %v277 = vadd.f32 %v271, %v275
      %v278 = vadd.f32 %v272, %v275
      %v279 = vmax.f32 %v277, 0.0
      %v280 = vmax.f32 %v278, 0.0
      %vm283 = vcmask 1040384
      %v284 = vrot.slane %v279, 7
      %v285 = vrot.slane %v280, 7
      %v286 = vsel %vm283, %v284, %v285
      %v289 = vsel %vm283, 0.0, %v284
      %vm290 = vcmask 1046528
      %v291 = vrot.slane %v279, 1
      %v292 = vrot.slane %v280, 1
      %v293 = vsel %vm290, %v291, %v292
      %v296 = vsel %vm290, %v292, 0.0
      %v297 = vpack.c.bf16 %v286, %v289
      %v298 = vpack.c.bf16 %v280, %v279
      %v299 = vpack.c.bf16 %v296, %v293
      %v300 = vld [vmem:[%s3] sm:$0xf]
      %v301 = vld [vmem:[%s3 + $0x4] sm:$0xf]
      %v302 = vld [vmem:[%s3 + $0x8] sm:$0xf]
      %v303 = vld [vmem:[%s3 + $0xc] sm:$0xf]
      %v304 = vld [vmem:[%s3 + $0x10] sm:$0xf]
      %v305 = vld [vmem:[%s3 + $0x14] sm:$0xf]
      %v306 = vld [vmem:[%s3 + $0x18] sm:$0xf]
      %v307 = vld [vmem:[%s3 + $0x1c] sm:$0xf]
      %v308 = vld [vmem:[%s3 + $0x20] sm:$0xf]
      %v309 = vld [vmem:[%s3 + $0x24] sm:$0xf]
      %v310 = vld [vmem:[%s3 + $0x28] sm:$0xf]
      %v311 = vld [vmem:[%s3 + $0x2c] sm:$0xf]
      %v312 = vld [vmem:[%s3 + $0x30] sm:$0xf]
      %v313 = vld [vmem:[%s3 + $0x34] sm:$0xf]
      %v314 = vld [vmem:[%s3 + $0x38] sm:$0xf]
      %v315 = vld [vmem:[%s3 + $0x3c] sm:$0xf]
      %v316 = vld [vmem:[%s3 + $0x40] sm:$0xf]
      %v317 = vld [vmem:[%s3 + $0x44] sm:$0xf]
      %v318 = vld [vmem:[%s3 + $0x48] sm:$0xf]
      %v319 = vld [vmem:[%s3 + $0x4c] sm:$0xf]
      %v320 = vld [vmem:[%s3 + $0x50] sm:$0xf]
      %v321 = vld [vmem:[%s3 + $0x54] sm:$0xf]
      %v322 = vld [vmem:[%s3 + $0x58] sm:$0xf]
      %v323 = vld [vmem:[%s3 + $0x5c] sm:$0xf]
      %v324 = vld [vmem:[%s3 + $0x60] sm:$0xf]
      %v325 = vld [vmem:[%s3 + $0x64] sm:$0xf]
      %v326 = vld [vmem:[%s3 + $0x68] sm:$0xf]
      %v327 = vld [vmem:[%s3 + $0x6c] sm:$0xf]
      %v328 = vld [vmem:[%s3 + $0x70] sm:$0xf]
      %v329 = vld [vmem:[%s3 + $0x74] sm:$0xf]
      %v330 = vld [vmem:[%s3 + $0x78] sm:$0xf]
      %v331 = vld [vmem:[%s3 + $0x7c] sm:$0xf]
      %v332 = vld [vmem:[%s3 + $0x80] sm:$0xf]
      %v333 = vld [vmem:[%s3 + $0x84] sm:$0xf]
      %v334 = vld [vmem:[%s3 + $0x88] sm:$0xf]
      %v335 = vld [vmem:[%s3 + $0x8c] sm:$0xf]
      %v336 = vld [vmem:[%s3 + $0x90] sm:$0xf]
      %v337 = vld [vmem:[%s3 + $0x94] sm:$0xf]
      %v338 = vld [vmem:[%s3 + $0x98] sm:$0xf]
      %v339 = vld [vmem:[%s3 + $0x9c] sm:$0xf]
      %v340 = vld [vmem:[%s3 + $0xa0] sm:$0xf]
      %v341 = vld [vmem:[%s3 + $0xa4] sm:$0xf]
      %v342 = vld [vmem:[%s3 + $0xa8] sm:$0xf]
      %v343 = vld [vmem:[%s3 + $0xac] sm:$0xf]
      %v344 = vld [vmem:[%s3 + $0xb0] sm:$0xf]
      %v345 = vld [vmem:[%s3 + $0xb4] sm:$0xf]
      %v346 = vld [vmem:[%s3 + $0xb8] sm:$0xf]
      %v347 = vld [vmem:[%s3 + $0xbc] sm:$0xf]
      %v348 = vld [vmem:[%s4] sm:$0x1]
      %v350 = vperm.slane %v348, 0
      %v400 = vunpack.c.l.b16 %v300
      %v401 = vunpack.c.l.b16 %v301
      %v402 = vunpack.c.l.b16 %v302
      %v403 = vunpack.c.l.b16 %v303
      %v404 = vunpack.c.l.b16 %v304
      %v405 = vunpack.c.l.b16 %v305
      %v406 = vunpack.c.l.b16 %v306
      %v407 = vunpack.c.l.b16 %v307
      %v408 = vunpack.c.l.b16 %v308
      %v409 = vunpack.c.l.b16 %v309
      %v410 = vunpack.c.l.b16 %v310
      %v411 = vunpack.c.l.b16 %v311
      %v412 = vunpack.c.l.b16 %v312
      %v413 = vunpack.c.l.b16 %v313
      %v414 = vunpack.c.l.b16 %v314
      %v415 = vunpack.c.l.b16 %v315
      %v416 = vunpack.c.l.b16 %v316
      %v417 = vunpack.c.l.b16 %v317
      %v418 = vunpack.c.l.b16 %v318
      %v419 = vunpack.c.l.b16 %v319
      %v420 = vunpack.c.l.b16 %v320
      %v421 = vunpack.c.l.b16 %v321
      %v422 = vunpack.c.l.b16 %v322
      %v423 = vunpack.c.l.b16 %v323
      %v424 = vunpack.c.l.b16 %v324
      %v425 = vunpack.c.l.b16 %v325
      %v426 = vunpack.c.l.b16 %v326
      %v427 = vunpack.c.l.b16 %v327
      %v428 = vunpack.c.l.b16 %v328
      %v429 = vunpack.c.l.b16 %v329
      %v430 = vunpack.c.l.b16 %v330
      %v431 = vunpack.c.l.b16 %v331
      %v432 = vunpack.c.l.b16 %v332
      %v433 = vunpack.c.l.b16 %v333
      %v434 = vunpack.c.l.b16 %v334
      %v435 = vunpack.c.l.b16 %v335
      %v436 = vunpack.c.l.b16 %v336
      %v437 = vunpack.c.l.b16 %v337
      %v438 = vunpack.c.l.b16 %v338
      %v439 = vunpack.c.l.b16 %v339
      %v440 = vunpack.c.l.b16 %v340
      %v441 = vunpack.c.l.b16 %v341
      %v442 = vunpack.c.l.b16 %v342
      %v443 = vunpack.c.l.b16 %v343
      %v444 = vunpack.c.l.b16 %v344
      %v445 = vunpack.c.l.b16 %v345
      %v446 = vunpack.c.l.b16 %v346
      %v447 = vunpack.c.l.b16 %v347
      %v448 = vpack.c.b16 %v401, %v400
      %v449 = vpack.c.b16 %v403, %v402
      %v450 = vpack.c.b16 %v405, %v404
      %v451 = vpack.c.b16 %v407, %v406
      %v452 = vpack.c.b16 %v409, %v408
      %v453 = vpack.c.b16 %v411, %v410
      %v454 = vpack.c.b16 %v413, %v412
      %v455 = vpack.c.b16 %v415, %v414
      %v456 = vpack.c.b16 %v417, %v416
      %v457 = vpack.c.b16 %v419, %v418
      %v458 = vpack.c.b16 %v421, %v420
      %v459 = vpack.c.b16 %v423, %v422
      %v460 = vpack.c.b16 %v425, %v424
      %v461 = vpack.c.b16 %v427, %v426
      %v462 = vpack.c.b16 %v429, %v428
      %v463 = vpack.c.b16 %v431, %v430
      %v464 = vpack.c.b16 %v433, %v432
      %v465 = vpack.c.b16 %v435, %v434
      %v466 = vpack.c.b16 %v437, %v436
      %v467 = vpack.c.b16 %v439, %v438
      %v468 = vpack.c.b16 %v441, %v440
      %v469 = vpack.c.b16 %v443, %v442
      %v470 = vpack.c.b16 %v445, %v444
      %v471 = vpack.c.b16 %v447, %v446
      %496 = vmatpush.bf16.msra.mxu0 %v455
      %497 = vmatpush.bf16.msra.mxu0 %v454
      %498 = vmatpush.bf16.msra.mxu0 %v453
      %499 = vmatpush.bf16.msra.mxu0 %v452
      %500 = vmatpush.bf16.msra.mxu0 %v451
      %501 = vmatpush.bf16.msra.mxu0 %v450
      %502 = vmatpush.bf16.msra.mxu0 %v449
      %503 = vmatpush.bf16.msra.mxu0 %v448
      %504 = vmatmul.bf16.gmra.mxu0 %v297
      %v505 = vpop.f32.mrf.mxu0
      %v506 = vadd.f32 %v350, %v505
      %v507 = vpop.f32.mrf.mxu0
      %v508 = vadd.f32 %v350, %v507
      %509 = vdwg.mxu0
      %510 = vmatpush.bf16.msra.mxu0 %v463
      %511 = vmatpush.bf16.msra.mxu0 %v462
      %512 = vmatpush.bf16.msra.mxu0 %v461
      %513 = vmatpush.bf16.msra.mxu0 %v460
      %514 = vmatpush.bf16.msra.mxu0 %v459
      %515 = vmatpush.bf16.msra.mxu0 %v458
      %516 = vmatpush.bf16.msra.mxu0 %v457
      %517 = vmatpush.bf16.msra.mxu0 %v456
      %518 = vmatmul.bf16.gmra.mxu0 %v298
      %v519 = vpop.f32.mrf.mxu0
      %v520 = vadd.f32 %v506, %v519
      %v521 = vpop.f32.mrf.mxu0
      %v522 = vadd.f32 %v508, %v521
      %523 = vdwg.mxu0
      %524 = vmatpush.bf16.msra.mxu0 %v471
      %525 = vmatpush.bf16.msra.mxu0 %v470
      %526 = vmatpush.bf16.msra.mxu0 %v469
      %527 = vmatpush.bf16.msra.mxu0 %v468
      %528 = vmatpush.bf16.msra.mxu0 %v467
      %529 = vmatpush.bf16.msra.mxu0 %v466
      %530 = vmatpush.bf16.msra.mxu0 %v465
      %531 = vmatpush.bf16.msra.mxu0 %v464
      %532 = vmatmul.bf16.gmra.mxu0 %v299
      %v533 = vpop.f32.mrf.mxu0
      %v534 = vadd.f32 %v520, %v533
      %v535 = vpop.f32.mrf.mxu0
      %v536 = vadd.f32 %v522, %v535
      %537 = vdwg.mxu0
      %v538 = vpack.c.bf16 %v534, %v534
      %v539 = vpack.c.bf16 %v536, %v536
      %540 = vst [vmem:[%s258] sm:$0xf] %v538
      %541 = vst [vmem:[%s258 + $0x4] sm:$0xf] %v539
      %v542 = vunpack.c.l.bf16 %v538
      %v543 = vunpack.c.l.bf16 %v539
      %v544 = vadd.f32 %v542, %v543
      %v545 = vrot.slane %v544, 4
      %v546 = vadd.f32 %v544, %v545
      %v547 = vrot.slane %v546, 2
      %v548 = vadd.f32 %v546, %v547
      %v549 = vrot.slane %v548, 1
      %v550 = vadd.f32 %v548, %v549
      %v551 = vmul.f32 %v542, %v542
      %v552 = vmul.f32 %v543, %v543
      %v553 = vadd.f32 %v551, %v552
      %v554 = vrot.slane %v553, 4
      %v555 = vadd.f32 %v553, %v554
      %v556 = vrot.slane %v555, 2
      %v557 = vadd.f32 %v555, %v556
      %v558 = vrot.slane %v557, 1
      %v559 = vadd.f32 %v557, %v558
      %v560 = vsel %vm283, %v550, %v559
      %561 = vst [vmem:[%s262] sm:$0x3] %v560
      %p562 = scmp.lt.s32.totalorder %s18, 1
      %s563 = scalar_select %p562, %s18, 1
      %s564 = smul.addr %s563, 2
      %s565 = smul.addr %s564, 4
      %s566 = scalar_lea.vmem %s5, %s565
      %p567 = scmp.lt.s32.totalorder %s18, 1
      %s568 = scalar_select %p567, %s18, 1
      %s569 = smul.addr %s568, 2
      %s570 = scalar_lea.vmem %s6, %s569
      // Predicated region
      $region41: #{residual_block.4} parent=39 // pred_check
        %p571 = pneg %p146
      $region42: #{residual_block.4} parent=39 // pred_check_branch
        %573 = sbr.rel (%p571) target = $region44
      $region43: #{residual_block.4} parent=39 // pred_region
        _
      $region44: #{residual_block.4} parent=39 // pred_fallthru
        _
      // Predicated region
      $region45: #{residual_block.4} parent=39 // pred_check
        %p574 = pneg %p172
      $region46: #{residual_block.4} parent=39 // pred_check_branch
        %576 = sbr.rel (%p574) target = $region48
      $region47: #{residual_block.4} parent=39 // pred_region
        _
      $region48: #{residual_block.4} parent=39 // pred_fallthru
        _
    $region40: #{residual_block.4} parent=5 // pred_fallthru
      _
    %p577 = scmp.le.s32.totalorder 2, %s13
    // Predicated region
    $region49: #{residual_block.4} parent=5 // pred_check
      %p578 = pneg %p577
    $region50: #{residual_block.4} parent=5 // pred_check_branch
      %580 = sbr.rel (%p578) target = $region52
    $region51: #{residual_block.4} parent=5 // pred_region
      %s581 = ssub.s32 %s13, 2
      // Predicated region
      $region53: #{residual_block.4} parent=51 // pred_check
        %p582 = pneg %p152
      $region54: #{residual_block.4} parent=51 // pred_check_branch
        %584 = sbr.rel (%p582) target = $region56
      $region55: #{residual_block.4} parent=51 // pred_region
        %p585 = scmp.lt.s32.totalorder %s19, 1
        %s586 = scalar_select %p585, %s19, 1
        %s587 = smul.addr %s586, 2
        %s588 = smul.addr %s587, 4
        %s589 = scalar_lea.vmem %s5, %s588
      $region56: #{residual_block.4} parent=51 // pred_fallthru
        _
      // Predicated region
      $region57: #{residual_block.4} parent=51 // pred_check
        %p590 = pneg %p178
      $region58: #{residual_block.4} parent=51 // pred_check_branch
        %592 = sbr.rel (%p590) target = $region60
      $region59: #{residual_block.4} parent=51 // pred_region
        %p593 = scmp.lt.s32.totalorder %s19, 1
        %s594 = scalar_select %p593, %s19, 1
        %s595 = smul.addr %s594, 2
        %s596 = scalar_lea.vmem %s6, %s595
      $region60: #{residual_block.4} parent=51 // pred_fallthru
        _
    $region52: #{residual_block.4} parent=5 // pred_fallthru
      _
  $region6: #{residual_block.4} parent=0 // loop_footer
    %s17 = sadd.s32 1, %s13
  $region7: #{residual_block.4} parent=0 // loop_footer_branch
    %12 = sbr.rel target = $region3
  $region8: #{residual_block.4} parent=0 // loop_exit
    _

// kernel: residual_block.5
$region0: #{residual_block.5}
  #allocation0 [shape = 'u32[]', space=smem, size = 0x4, offset = 0x4, fixed_abs, tag = 'smem constant byte address 0x4 - core index']
  #allocation1 [shape = 'u32[72,128]{1,0:T(1,128)}', space=vmem, size = 0x9000, scoped, tag = 'internal scratch']
  %s0 = inlined_call_operand.vmem [shape: bf16[2,16,128], index: 0, kind: input, shape index: {}]
  %s1 = inlined_call_operand.vmem [shape: f32[2,16,128], index: 1, kind: input, shape index: {}]
  %s2 = inlined_call_operand.vmem [shape: f32[1,128], index: 2, kind: input, shape index: {}]
  %s3 = inlined_call_operand.vmem [shape: f32[1,128], index: 3, kind: input, shape index: {}]
  %s4 = inlined_call_operand.vmem [shape: bf16[256,128], index: 4, kind: input, shape index: {}]
  %s5 = inlined_call_operand.vmem [shape: f32[1,128], index: 5, kind: input, shape index: {}]
  %s6 = inlined_call_operand.vmem [shape: f32[2,16,128], index: 6, kind: output, shape index: {0}]
  %s7 = inlined_call_operand.vmem [shape: f32[2,8,128], index: 7, kind: output, shape index: {1}]
  %8 = xla_tuple %s6, %s7
  %s9 = sld [smem:[#allocation0]]
  $region65: #{residual_block.5} parent=0
    _
  %s11 = ssub.s32 1, %s9
  %s12 = scalar_select 0, %s11, %s9
  loop: start=0, step=1, limit=4
  $region2: #{residual_block.5} parent=0 // loop_pre_header
    _
  $region3: #{residual_block.5} parent=0 // loop_header
    %s14 = sphi 0, %s18
    %p15 = scmp.ge.s32.totalorder %s14, 4
    %s24 = sphi 0, %s26
    %s27 = sphi 0, %s24
    %s28 = sphi 0, %s27
    %s44 = sphi 0, %s28
    %s50 = sphi 0, %s52
    %s53 = sphi 0, %s50
    %s54 = sphi 0, %s53
    %s70 = sphi 0, %s54
    %s74 = sphi 0, %s74
    %s76 = sphi 0, %s74
    %s77 = sphi 0, %s76
    %s91 = sphi 0, %s77
    %s95 = sphi 0, %s95
    %s97 = sphi 0, %s95
    %s98 = sphi 0, %s97
    %s112 = sphi 0, %s98
    %s116 = sphi 0, %s116
    %s118 = sphi 0, %s116
    %s119 = sphi 0, %s118
    %s133 = sphi 0, %s119
    %s137 = sphi 0, %s137
    %s139 = sphi 0, %s137
    %s140 = sphi 0, %s139
    %s154 = sphi 0, %s140
    %s160 = sphi 0, %s162
    %s163 = sphi 0, %s160
    %s164 = sphi 0, %s163
    %s180 = sphi 0, %s164
    %s186 = sphi 0, %s188
    %s189 = sphi 0, %s186
    %s190 = sphi 0, %s189
    %s206 = sphi 0, %s190
  $region4: #{residual_block.5} parent=0 // loop_header_branch
    %17 = sbr.rel (%p15) target = $region8
  $region5: #{residual_block.5} parent=0 // loop_body
    %s19 = ssub.s32 %s14, 1
    %s20 = ssub.s32 %s14, 2
    %s21 = sadd.s32 %s14, 1
    %s22 = ssub.s32 %s14, %s21
    %p23 = scmp.eq.s32.totalorder %s22, 0
    %s25 = sadd.s32 %s24, 1
    %s26 = scalar_select %p23, %s24, %s25
    %p29 = pneg %p23
    %p30 = scmp.eq.s32.totalorder %s14, 1
    %p31 = por %p29, %p30
    %p32 = scmp.ne.s32.totalorder %s24, %s27
    %p33 = scmp.eq.s32.totalorder %s14, 0
    %p34 = por %p32, %p33
    %p35 = scmp.ne.s32.totalorder %s24, %s27
    %p36 = scmp.eq.s32.totalorder %s19, 1
    %p37 = por %p35, %p36
    %p38 = scmp.ne.s32.totalorder %s27, %s28
    %p39 = scmp.eq.s32.totalorder %s19, 0
    %p40 = por %p38, %p39
    %p41 = scmp.ne.s32.totalorder %s27, %s28
    %p42 = scmp.eq.s32.totalorder %s20, 1
    %p43 = por %p41, %p42
    %p45 = scmp.ne.s32.totalorder %s28, %s44
    %p46 = scmp.eq.s32.totalorder %s20, 0
    %p47 = por %p45, %p46
    %s48 = ssub.s32 %s14, %s21
    %p49 = scmp.eq.s32.totalorder %s48, 0
    %s51 = sadd.s32 %s50, 1
    %s52 = scalar_select %p49, %s50, %s51
    %p55 = pneg %p49
    %p56 = scmp.eq.s32.totalorder %s14, 1
    %p57 = por %p55, %p56
    %p58 = scmp.ne.s32.totalorder %s50, %s53
    %p59 = scmp.eq.s32.totalorder %s14, 0
    %p60 = por %p58, %p59
    %p61 = scmp.ne.s32.totalorder %s50, %s53
    %p62 = scmp.eq.s32.totalorder %s19, 1
    %p63 = por %p61, %p62
    %p64 = scmp.ne.s32.totalorder %s53, %s54
    %p65 = scmp.eq.s32.totalorder %s19, 0
    %p66 = por %p64, %p65
    %p67 = scmp.ne.s32.totalorder %s53, %s54
    %p68 = scmp.eq.s32.totalorder %s20, 1
    %p69 = por %p67, %p68
    %p71 = scmp.ne.s32.totalorder %s54, %s70
    %p72 = scmp.eq.s32.totalorder %s20, 0
    %p73 = por %p71, %p72
    %s75 = sadd.s32 %s74, 1
    %p78 = scmp.eq.s32.totalorder %s14, 1
    %p79 = scmp.ne.s32.totalorder %s74, %s76
    %p80 = scmp.eq.s32.totalorder %s14, 0
    %p81 = por %p79, %p80
    %p82 = scmp.ne.s32.totalorder %s74, %s76
    %p83 = scmp.eq.s32.totalorder %s19, 1
    %p84 = por %p82, %p83
    %p85 = scmp.ne.s32.totalorder %s76, %s77
    %p86 = scmp.eq.s32.totalorder %s19, 0
    %p87 = por %p85, %p86
    %p88 = scmp.ne.s32.totalorder %s76, %s77
    %p89 = scmp.eq.s32.totalorder %s20, 1
    %p90 = por %p88, %p89
    %p92 = scmp.ne.s32.totalorder %s77, %s91
    %p93 = scmp.eq.s32.totalorder %s20, 0
    %p94 = por %p92, %p93
    %s96 = sadd.s32 %s95, 1
    %p99 = scmp.eq.s32.totalorder %s14, 1
    %p100 = scmp.ne.s32.totalorder %s95, %s97
    %p101 = scmp.eq.s32.totalorder %s14, 0
    %p102 = por %p100, %p101
    %p103 = scmp.ne.s32.totalorder %s95, %s97
    %p104 = scmp.eq.s32.totalorder %s19, 1
    %p105 = por %p103, %p104
    %p106 = scmp.ne.s32.totalorder %s97, %s98
    %p107 = scmp.eq.s32.totalorder %s19, 0
    %p108 = por %p106, %p107
    %p109 = scmp.ne.s32.totalorder %s97, %s98
    %p110 = scmp.eq.s32.totalorder %s20, 1
    %p111 = por %p109, %p110
    %p113 = scmp.ne.s32.totalorder %s98, %s112
    %p114 = scmp.eq.s32.totalorder %s20, 0
    %p115 = por %p113, %p114
    %s117 = sadd.s32 %s116, 1
    %p120 = scmp.eq.s32.totalorder %s14, 1
    %p121 = scmp.ne.s32.totalorder %s116, %s118
    %p122 = scmp.eq.s32.totalorder %s14, 0
    %p123 = por %p121, %p122
    %p124 = scmp.ne.s32.totalorder %s116, %s118
    %p125 = scmp.eq.s32.totalorder %s19, 1
    %p126 = por %p124, %p125
    %p127 = scmp.ne.s32.totalorder %s118, %s119
    %p128 = scmp.eq.s32.totalorder %s19, 0
    %p129 = por %p127, %p128
    %p130 = scmp.ne.s32.totalorder %s118, %s119
    %p131 = scmp.eq.s32.totalorder %s20, 1
    %p132 = por %p130, %p131
    %p134 = scmp.ne.s32.totalorder %s119, %s133
    %p135 = scmp.eq.s32.totalorder %s20, 0
    %p136 = por %p134, %p135
    %s138 = sadd.s32 %s137, 1
    %p141 = scmp.eq.s32.totalorder %s14, 1
    %p142 = scmp.ne.s32.totalorder %s137, %s139
    %p143 = scmp.eq.s32.totalorder %s14, 0
    %p144 = por %p142, %p143
    %p145 = scmp.ne.s32.totalorder %s137, %s139
    %p146 = scmp.eq.s32.totalorder %s19, 1
    %p147 = por %p145, %p146
    %p148 = scmp.ne.s32.totalorder %s139, %s140
    %p149 = scmp.eq.s32.totalorder %s19, 0
    %p150 = por %p148, %p149
    %p151 = scmp.ne.s32.totalorder %s139, %s140
    %p152 = scmp.eq.s32.totalorder %s20, 1
    %p153 = por %p151, %p152
    %p155 = scmp.ne.s32.totalorder %s140, %s154
    %p156 = scmp.eq.s32.totalorder %s20, 0
    %p157 = por %p155, %p156
    %s158 = ssub.s32 %s14, %s21
    %p159 = scmp.eq.s32.totalorder %s158, 0
    %s161 = sadd.s32 %s160, 1
    %s162 = scalar_select %p159, %s160, %s161
    %p165 = pneg %p159
    %p166 = scmp.eq.s32.totalorder %s14, 1
    %p167 = por %p165, %p166
    %p168 = scmp.ne.s32.totalorder %s160, %s163
    %p169 = scmp.eq.s32.totalorder %s14, 0
    %p170 = por %p168, %p169
    %p171 = scmp.ne.s32.totalorder %s160, %s163
    %p172 = scmp.eq.s32.totalorder %s19, 1
    %p173 = por %p171, %p172
    %p174 = scmp.ne.s32.totalorder %s163, %s164
    %p175 = scmp.eq.s32.totalorder %s19, 0
    %p176 = por %p174, %p175
    %p177 = scmp.ne.s32.totalorder %s163, %s164
    %p178 = scmp.eq.s32.totalorder %s20, 1
    %p179 = por %p177, %p178
    %p181 = scmp.ne.s32.totalorder %s164, %s180
    %p182 = scmp.eq.s32.totalorder %s20, 0
    %p183 = por %p181, %p182
    %s184 = ssub.s32 %s14, %s21
    %p185 = scmp.eq.s32.totalorder %s184, 0
    %s187 = sadd.s32 %s186, 1
    %s188 = scalar_select %p185, %s186, %s187
    %p191 = pneg %p185
    %p192 = scmp.eq.s32.totalorder %s14, 1
    %p193 = por %p191, %p192
    %p194 = scmp.ne.s32.totalorder %s186, %s189
    %p195 = scmp.eq.s32.totalorder %s14, 0
    %p196 = por %p194, %p195
    %p197 = scmp.ne.s32.totalorder %s186, %s189
    %p198 = scmp.eq.s32.totalorder %s19, 1
    %p199 = por %p197, %p198
    %p200 = scmp.ne.s32.totalorder %s189, %s190
    %p201 = scmp.eq.s32.totalorder %s19, 0
    %p202 = por %p200, %p201
    %p203 = scmp.ne.s32.totalorder %s189, %s190
    %p204 = scmp.eq.s32.totalorder %s20, 1
    %p205 = por %p203, %p204
    %p207 = scmp.ne.s32.totalorder %s190, %s206
    %p208 = scmp.eq.s32.totalorder %s20, 0
    %p209 = por %p207, %p208
    %p210 = scmp.le.s32.totalorder 1, %s14
    %p211 = scmp.lt.s32.totalorder %s14, 3
    %p212 = pnand %p210, %p211
    %p213 = pneg %p212
    // Predicated region
    $region9: #{residual_block.5} parent=5 // pred_check
      _
    $region10: #{residual_block.5} parent=5 // pred_check_branch
      %215 = sbr.rel (%p212) target = $region12
    $region11: #{residual_block.5} parent=5 // pred_region
      %s216 = ssub.s32 %s14, 1
      // Predicated region
      $region13: #{residual_block.5} parent=11 // pred_check
        %p217 = pneg %p87
      $region14: #{residual_block.5} parent=11 // pred_check_branch
        %219 = sbr.rel (%p217) target = $region16
      $region15: #{residual_block.5} parent=11 // pred_region
        _
      $region16: #{residual_block.5} parent=11 // pred_fallthru
        _
      // Predicated region
      $region17: #{residual_block.5} parent=11 // pred_check
        %p220 = pneg %p108
      $region18: #{residual_block.5} parent=11 // pred_check_branch
        %222 = sbr.rel (%p220) target = $region20
      $region19: #{residual_block.5} parent=11 // pred_region
        _
      $region20: #{residual_block.5} parent=11 // pred_fallthru
        _
      // Predicated region
      $region21: #{residual_block.5} parent=11 // pred_check
        %p223 = pneg %p129
      $region22: #{residual_block.5} parent=11 // pred_check_branch
        %225 = sbr.rel (%p223) target = $region24
      $region23: #{residual_block.5} parent=11 // pred_region
        _
      $region24: #{residual_block.5} parent=11 // pred_fallthru
        _
      // Predicated region
      $region25: #{residual_block.5} parent=11 // pred_check
        %p226 = pneg %p150
      $region26: #{residual_block.5} parent=11 // pred_check_branch
        %228 = sbr.rel (%p226) target = $region28
      $region27: #{residual_block.5} parent=11 // pred_region
        _
      $region28: #{residual_block.5} parent=11 // pred_fallthru
        _
    $region12: #{residual_block.5} parent=5 // pred_fallthru
      _
    %p229 = scmp.lt.s32.totalorder %s14, 2
    // Predicated region
    $region29: #{residual_block.5} parent=5 // pred_check
      %p230 = pneg %p229
    $region30: #{residual_block.5} parent=5 // pred_check_branch
      %232 = sbr.rel (%p230) target = $region32
    $region31: #{residual_block.5} parent=5 // pred_region
      // Predicated region
      $region33: #{residual_block.5} parent=31 // pred_check
        %p233 = pneg %p34
      $region34: #{residual_block.5} parent=31 // pred_check_branch
        %235 = sbr.rel (%p233) target = $region36
      $region35: #{residual_block.5} parent=31 // pred_region
        %p236 = scmp.lt.s32.totalorder %s14, 1
        %s237 = scalar_select %p236, %s14, 1
        %s238 = smul.addr %s237, 2
        %s239 = smul.addr %s238, 4
        %s240 = scalar_lea.vmem %s0, %s239
      $region36: #{residual_block.5} parent=31 // pred_fallthru
        _
      // Predicated region
      $region37: #{residual_block.5} parent=31 // pred_check
        %p241 = pneg %p60
      $region38: #{residual_block.5} parent=31 // pred_check_branch
        %243 = sbr.rel (%p241) target = $region40
      $region39: #{residual_block.5} parent=31 // pred_region
        %p244 = scmp.lt.s32.totalorder %s14, 1
        %s245 = scalar_select %p244, %s14, 1
        %s246 = smul.addr %s245, 2
        %s247 = smul.addr %s246, 8
        %s248 = scalar_lea.vmem %s1, %s247
      $region40: #{residual_block.5} parent=31 // pred_fallthru
        _
    $region32: #{residual_block.5} parent=5 // pred_fallthru
      _
    %p249 = scmp.le.s32.totalorder 1, %s14
    %p250 = scmp.lt.s32.totalorder %s14, 3
    %p251 = pnand %p249, %p250
    %p252 = pneg %p251
    // Predicated region
    $region41: #{residual_block.5} parent=5 // pred_check
      _
    $region42: #{residual_block.5} parent=5 // pred_check_branch
      %254 = sbr.rel (%p251) target = $region44
    $region43: #{residual_block.5} parent=5 // pred_region
      %s255 = ssub.s32 %s14, 1
      %p256 = scmp.lt.s32.totalorder %s19, 1
      %s257 = scalar_select %p256, %s19, 1
      %s258 = smul.addr %s257, 2
      %s259 = smul.addr %s258, 4
      %s260 = scalar_lea.vmem %s0, %s259
      %p261 = pneg %p40
      %p262 = pneg %p37
      %p263 = scmp.lt.s32.totalorder %s19, 1
      %s264 = scalar_select %p263, %s19, 1
      %s265 = smul.addr %s264, 2
      %s266 = smul.addr %s265, 8
      %s267 = scalar_lea.vmem %s1, %s266
      %p268 = pneg %p66
      %p269 = pneg %p63
      %p270 = pneg %p87
      %p271 = pneg %p84
      %p272 = pneg %p108
      %p273 = pneg %p105
      %p274 = pneg %p129
      %p275 = pneg %p126
      %p276 = pneg %p150
      %p277 = pneg %p147
      %p278 = pneg %p176
      %p279 = pneg %p173
      %p280 = scmp.lt.s32.totalorder %s19, 1
      %s281 = scalar_select %p280, %s19, 1
      %s282 = smul.addr %s281, 2
      %s283 = smul.addr %s282, 8
      %s284 = scalar_lea.vmem %s6, %s283
      %p285 = pneg %p202
      %p286 = pneg %p199
      %p287 = scmp.lt.s32.totalorder %s19, 1
      %s288 = scalar_select %p287, %s19, 1
      %s289 = smul.addr %s288, 8
      %s290 = scalar_lea.vmem %s7, %s289
      %p291 = scmp.lt.s32.totalorder %s19, 1
      %s292 = scalar_select %p291, %s19, 1
      %s293 = smul.addr %s292, 2
      %s294 = smul.addr %s293, 4
      %s295 = scalar_lea.vmem %s0, %s294
      %p296 = scmp.lt.s32.totalorder %s19, 1
      %s297 = scalar_select %p296, %s19, 1
      %s298 = smul.addr %s297, 2
      %s299 = smul.addr %s298, 8
      %s300 = scalar_lea.vmem %s1, %s299
      %p301 = scmp.lt.s32.totalorder %s19, 1
      %s302 = scalar_select %p301, %s19, 1
      %s303 = smul.addr %s302, 2
      %s304 = smul.addr %s303, 8
      %s305 = scalar_lea.vmem %s6, %s304
      %p306 = scmp.lt.s32.totalorder %s19, 1
      %s307 = scalar_select %p306, %s19, 1
      %s308 = smul.addr %s307, 8
      %s309 = scalar_lea.vmem %s7, %s308
      %v310 = vld [vmem:[%s300] sm:$0xff]
      %v311 = vld [vmem:[%s300 + $0x8] sm:$0xff]
      %v312 = vld [vmem:[%s295] sm:$0xf]
      %v313 = vld [vmem:[%s295 + $0x4] sm:$0xf]
      %v314 = vld [vmem:[%s2] sm:$0x1]
      %v315 = vunpack.c.l.bf16 %v312
      %v316 = vunpack.c.l.bf16 %v313
      %v318 = vperm.slane %v314, 0
      %v320 = vmul.f32 %v315, %v318
      %v321 = vmul.f32 %v316, %v318
      %v322 = vadd.f32 %v310, %v320
      %v323 = vadd.f32 %v311, %v321
      %v324 = vld [vmem:[%s3] sm:$0x1]
      %v326 = vperm.slane %v324, 0
      %v328 = vadd.f32 %v322, %v326
      %v329 = vadd.f32 %v323, %v326
      %v330 = vmax.f32 %v328, 0.0
      %v331 = vmax.f32 %v329, 0.0
      %332 = vst [vmem:[%s305] sm:$0xff] %v330
      %333 = vst [vmem:[%s305 + $0x8] sm:$0xff] %v331
      %v334 = vld [vmem:[%s305] ss:$2 sm:$0xff]
      %s335 = scalar_lea.vmem %s305, 1
      %v336 = vld [vmem:[%s335] ss:$2 sm:$0xff]
      %v337 = vpack.c.bf16 %v334, %v334
      %v338 = vpack.c.bf16 %v336, %v336
      %v339 = vld [vmem:[%s4] sm:$0xf]
      %v340 = vld [vmem:[%s4 + $0x4] sm:$0xf]
      %v341 = vld [vmem:[%s4 + $0x8] sm:$0xf]
      %v342 = vld [vmem:[%s4 + $0xc] sm:$0xf]
      %v343 = vld [vmem:[%s4 + $0x10] sm:$0xf]
      %v344 = vld [vmem:[%s4 + $0x14] sm:$0xf]
      %v345 = vld [vmem:[%s4 + $0x18] sm:$0xf]
      %v346 = vld [vmem:[%s4 + $0x1c] sm:$0xf]
      %v347 = vld [vmem:[%s4 + $0x20] sm:$0xf]
      %v348 = vld [vmem:[%s4 + $0x24] sm:$0xf]
      %v349 = vld [vmem:[%s4 + $0x28] sm:$0xf]
      %v350 = vld [vmem:[%s4 + $0x2c] sm:$0xf]
      %v351 = vld [vmem:[%s4 + $0x30] sm:$0xf]
      %v352 = vld [vmem:[%s4 + $0x34] sm:$0xf]
      %v353 = vld [vmem:[%s4 + $0x38] sm:$0xf]
      %v354 = vld [vmem:[%s4 + $0x3c] sm:$0xf]
      %v355 = vld [vmem:[%s4 + $0x40] sm:$0xf]
      %v356 = vld [vmem:[%s4 + $0x44] sm:$0xf]
      %v357 = vld [vmem:[%s4 + $0x48] sm:$0xf]
      %v358 = vld [vmem:[%s4 + $0x4c] sm:$0xf]
      %v359 = vld [vmem:[%s4 + $0x50] sm:$0xf]
      %v360 = vld [vmem:[%s4 + $0x54] sm:$0xf]
      %v361 = vld [vmem:[%s4 + $0x58] sm:$0xf]
      %v362 = vld [vmem:[%s4 + $0x5c] sm:$0xf]
      %v363 = vld [vmem:[%s4 + $0x60] sm:$0xf]
      %v364 = vld [vmem:[%s4 + $0x64] sm:$0xf]
      %v365 = vld [vmem:[%s4 + $0x68] sm:$0xf]
      %v366 = vld [vmem:[%s4 + $0x6c] sm:$0xf]
      %v367 = vld [vmem:[%s4 + $0x70] sm:$0xf]
      %v368 = vld [vmem:[%s4 + $0x74] sm:$0xf]
      %v369 = vld [vmem:[%s4 + $0x78] sm:$0xf]
      %v370 = vld [vmem:[%s4 + $0x7c] sm:$0xf]
      %v371 = vld [vmem:[%s5] sm:$0x1]
      %v373 = vperm.slane %v371, 0
      %v407 = vunpack.c.l.b16 %v339
      %v408 = vunpack.c.l.b16 %v340
      %v409 = vunpack.c.l.b16 %v341
      %v410 = vunpack.c.l.b16 %v342
      %v411 = vunpack.c.l.b16 %v343
      %v412 = vunpack.c.l.b16 %v344
      %v413 = vunpack.c.l.b16 %v345
      %v414 = vunpack.c.l.b16 %v346
      %v415 = vunpack.c.l.b16 %v347
      %v416 = vunpack.c.l.b16 %v348
      %v417 = vunpack.c.l.b16 %v349
      %v418 = vunpack.c.l.b16 %v350
      %v419 = vunpack.c.l.b16 %v351
      %v420 = vunpack.c.l.b16 %v352
      %v421 = vunpack.c.l.b16 %v353
      %v422 = vunpack.c.l.b16 %v354
      %v423 = vunpack.c.l.b16 %v355
      %v424 = vunpack.c.l.b16 %v356
      %v425 = vunpack.c.l.b16 %v357
      %v426 = vunpack.c.l.b16 %v358
      %v427 = vunpack.c.l.b16 %v359
      %v428 = vunpack.c.l.b16 %v360
      %v429 = vunpack.c.l.b16 %v361
      %v430 = vunpack.c.l.b16 %v362
      %v431 = vunpack.c.l.b16 %v363
      %v432 = vunpack.c.l.b16 %v364
      %v433 = vunpack.c.l.b16 %v365
      %v434 = vunpack.c.l.b16 %v366
      %v435 = vunpack.c.l.b16 %v367
      %v436 = vunpack.c.l.b16 %v368
      %v437 = vunpack.c.l.b16 %v369
      %v438 = vunpack.c.l.b16 %v370
      %v439 = vpack.c.b16 %v408, %v407
      %v440 = vpack.c.b16 %v410, %v409
      %v441 = vpack.c.b16 %v412, %v411
      %v442 = vpack.c.b16 %v414, %v413
      %v443 = vpack.c.b16 %v416, %v415
      %v444 = vpack.c.b16 %v418, %v417
      %v445 = vpack.c.b16 %v420, %v419
      %v446 = vpack.c.b16 %v422, %v421
      %v447 = vpack.c.b16 %v424, %v423
      %v448 = vpack.c.b16 %v426, %v425
      %v449 = vpack.c.b16 %v428, %v427
      %v450 = vpack.c.b16 %v430, %v429
      %v451 = vpack.c.b16 %v432, %v431
      %v452 = vpack.c.b16 %v434, %v433
      %v453 = vpack.c.b16 %v436, %v435
      %v454 = vpack.c.b16 %v438, %v437
      %471 = vmatpush.bf16.msra.mxu0 %v446
      %472 = vmatpush.bf16.msra.mxu0 %v445
      %473 = vmatpush.bf16.msra.mxu0 %v444
      %474 = vmatpush.bf16.msra.mxu0 %v443
      %475 = vmatpush.bf16.msra.mxu0 %v442
      %476 = vmatpush.bf16.msra.mxu0 %v441
      %477 = vmatpush.bf16.msra.mxu0 %v440
      %478 = vmatpush.bf16.msra.mxu0 %v439
      %479 = vmatmul.bf16.gmra.mxu0 %v337
      %v480 = vpop.f32.mrf.mxu0
      %v481 = vadd.f32 %v373, %v480
      %v482 = vpop.f32.mrf.mxu0
      %483 = vdwg.mxu0
      %484 = vmatpush.bf16.msra.mxu0 %v454
      %485 = vmatpush.bf16.msra.mxu0 %v453
      %486 = vmatpush.bf16.msra.mxu0 %v452
      %487 = vmatpush.bf16.msra.mxu0 %v451
      %488 = vmatpush.bf16.msra.mxu0 %v450
      %489 = vmatpush.bf16.msra.mxu0 %v449
      %490 = vmatpush.bf16.msra.mxu0 %v448
      %491 = vmatpush.bf16.msra.mxu0 %v447
      %492 = vmatmul.bf16.gmra.mxu0 %v338
      %v493 = vpop.f32.mrf.mxu0
      %v494 = vadd.f32 %v481, %v493
      %v495 = vpop.f32.mrf.mxu0
      %496 = vdwg.mxu0
      %497 = vst [vmem:[%s309] sm:$0xff] %v494
      %p498 = scmp.lt.s32.totalorder %s19, 1
      %s499 = scalar_select %p498, %s19, 1
      %s500 = smul.addr %s499, 2
      %s501 = smul.addr %s500, 8
      %s502 = scalar_lea.vmem %s6, %s501
      %p503 = scmp.lt.s32.totalorder %s19, 1
      %s504 = scalar_select %p503, %s19, 1
      %s505 = smul.addr %s504, 8
      %s506 = scalar_lea.vmem %s7, %s505
      // Predicated region
      $region45: #{residual_block.5} parent=43 // pred_check
        %p507 = pneg %p173
      $region46: #{residual_block.5} parent=43 // pred_check_branch
        %509 = sbr.rel (%p507) target = $region48
      $region47: #{residual_block.5} parent=43 // pred_region
        _
      $region48: #{residual_block.5} parent=43 // pred_fallthru
        _
      // Predicated region
      $region49: #{residual_block.5} parent=43 // pred_check
        %p510 = pneg %p199
      $region50: #{residual_block.5} parent=43 // pred_check_branch
        %512 = sbr.rel (%p510) target = $region52
      $region51: #{residual_block.5} parent=43 // pred_region
        _
      $region52: #{residual_block.5} parent=43 // pred_fallthru
        _
    $region44: #{residual_block.5} parent=5 // pred_fallthru
      _
    %p513 = scmp.le.s32.totalorder 2, %s14
    // Predicated region
    $region53: #{residual_block.5} parent=5 // pred_check
      %p514 = pneg %p513
    $region54: #{residual_block.5} parent=5 // pred_check_branch
      %516 = sbr.rel (%p514) target = $region56
    $region55: #{residual_block.5} parent=5 // pred_region
      %s517 = ssub.s32 %s14, 2
      // Predicated region
      $region57: #{residual_block.5} parent=55 // pred_check
        %p518 = pneg %p179
      $region58: #{residual_block.5} parent=55 // pred_check_branch
        %520 = sbr.rel (%p518) target = $region60
      $region59: #{residual_block.5} parent=55 // pred_region
        %p521 = scmp.lt.s32.totalorder %s20, 1
        %s522 = scalar_select %p521, %s20, 1
        %s523 = smul.addr %s522, 2
        %s524 = smul.addr %s523, 8
        %s525 = scalar_lea.vmem %s6, %s524
      $region60: #{residual_block.5} parent=55 // pred_fallthru
        _
      // Predicated region
      $region61: #{residual_block.5} parent=55 // pred_check
        %p526 = pneg %p205
      $region62: #{residual_block.5} parent=55 // pred_check_branch
        %528 = sbr.rel (%p526) target = $region64
      $region63: #{residual_block.5} parent=55 // pred_region
        %p529 = scmp.lt.s32.totalorder %s20, 1
        %s530 = scalar_select %p529, %s20, 1
        %s531 = smul.addr %s530, 8
        %s532 = scalar_lea.vmem %s7, %s531
      $region64: #{residual_block.5} parent=55 // pred_fallthru
        _
    $region56: #{residual_block.5} parent=5 // pred_fallthru
      _
  $region6: #{residual_block.5} parent=0 // loop_footer
    %s18 = sadd.s32 1, %s14
  $region7: #{residual_block.5} parent=0 // loop_footer_branch
    %13 = sbr.rel target = $region3
  $region8: #{residual_block.5} parent=0 // loop_exit
    _

</llo_original>
